<compile_context>
chip_gen: v6e
topology: v6e:2x2x1
jax: 0.10.0
libtpu: 0.0.40
codegen_flags: <defaults>
</compile_context>

<pallas_src>
import jax
import jax.numpy as jnp
from jax.experimental import pallas as pl
from jax.experimental.pallas import tpu as pltpu


def _round_up(a, m):
    return ((a + m - 1) // m) * m


def _make_kernel(N, E, Vp):
    """Build the fused forward kernel for given (static) feature sizes."""
    f32 = jnp.float32
    bf16 = jnp.bfloat16

    # Row offsets of the weight blocks inside the square slab (all static,
    # all multiples of 128 so slices stay tile-aligned).
    o_eye = 0                # block-diag eye-out weight, (2N, 2E)
    o_c1 = o_eye + 2 * N     # COMBINE linear 1,          (2E, N)
    o_c2 = o_c1 + 2 * E      # COMBINE linear 2,          (N, N)
    o_d1 = o_c2 + N          # DECIDE linear 1,           (N, N)
    o_d2 = o_d1 + N          # DECIDE linear 2,           (N, Vp)

    def kernel(x_ref, ww_ref, ws_ref, b_ref, out_ref):
        x = x_ref[...]                       # (TB, N) f32
        xb = x.astype(bf16)

        # Bias rows (all f32, read from one slab).
        b_in = b_ref[0:1, 0:2 * N]           # [b1a | b2a]
        b_eye = b_ref[1:2, 0:2 * E]          # [b1b | b2b]
        b_c1 = b_ref[2:3, 0:N]
        b_c2 = b_ref[3:4, 0:N]
        b_d1 = b_ref[4:5, 0:N]
        b_d2 = b_ref[5:6, 0:Vp]
        wa2 = b_ref[6:7, 0:2 * E]            # [wa | wa]
        ba = b_ref[7:8, :][:, 0:1]           # attention bias (1, 1)

        # ---- EYE1 + EYE2 fused ------------------------------------------
        # h = relu(x @ [w1a|w2a] + [b1a|b2a])           -> (TB, 2N)
        h = jnp.dot(xb, ww_ref[...], preferred_element_type=f32) + b_in
        h = jnp.maximum(h, 0.0)
        # eyes = h @ blockdiag(w1b, w2b) + [b1b|b2b]    -> (TB, 2E)
        eyes = jnp.dot(h.astype(bf16), ws_ref[o_eye:o_c1, 0:2 * E],
                       preferred_element_type=f32) + b_eye

        # ---- attention: 2-way softmax over per-eye logits (f32 path) -----
        lane = jax.lax.broadcasted_iota(jnp.int32, (1, 2 * E), 1)
        m1 = (lane < E).astype(f32)                     # 1 on eye1 lanes
        prod = eyes * wa2
        a1 = jnp.sum(prod * m1, axis=-1, keepdims=True) + ba        # (TB, 1)
        a2 = jnp.sum(prod * (1.0 - m1), axis=-1, keepdims=True) + ba
        mx = jnp.maximum(a1, a2)
        e1 = jnp.exp(a1 - mx)
        e2 = jnp.exp(a2 - mx)
        inv = pl.reciprocal(e1 + e2, approx=True)       # EUP vrcp
        scale = jnp.where(lane < E, e1 * inv, e2 * inv)  # (TB, 2E)
        eyes_w = (eyes * scale).astype(bf16)             # [aw1*eye1 | aw2*eye2]

        # ---- COMBINE: single (2E, N) dot, ReLU, (N, N) dot ----------------
        c = jnp.dot(eyes_w, ws_ref[o_c1:o_c2, 0:N],
                    preferred_element_type=f32) + b_c1
        c = jnp.maximum(c, 0.0)
        combined = jnp.dot(c.astype(bf16), ws_ref[o_c2:o_d1, 0:N],
                           preferred_element_type=f32) + b_c2

        # ---- DECIDE on residual (x kept f32) ------------------------------
        z = x + combined
        d = jnp.dot(z.astype(bf16), ws_ref[o_d1:o_d2, 0:N],
                    preferred_element_type=f32) + b_d1
        d = jnp.maximum(d, 0.0)
        out_ref[...] = jnp.dot(d.astype(bf16), ws_ref[o_d2:o_d2 + N, 0:Vp],
                               preferred_element_type=f32) + b_d2

    return kernel


def _pack_params(p, N, E, Vp):
    """Pack the 20 logical parameters into 3 slabs (2 bf16 weight, 1 f32 bias)."""
    bf16, f32 = jnp.bfloat16, jnp.float32
    V = p["wd2"].shape[1]
    W = max(2 * E, N, Vp)           # lane width of the square slab

    def padw(a):
        return jnp.pad(a, ((0, 0), (0, W - a.shape[1])))

    # [w1a | w2a] -> (N, 2N): one MXU push produces both eye hidden layers.
    w_wide = jnp.concatenate([p["w1a"], p["w2a"]], axis=1).astype(bf16)

    # blockdiag(w1b, w2b) -> (2N, 2E): one push produces both eyes.
    zNE = jnp.zeros((N, E), f32)
    w_eye_out = jnp.concatenate(
        [jnp.concatenate([p["w1b"], zNE], axis=1),
         jnp.concatenate([zNE, p["w2b"]], axis=1)], axis=0)

    wc1 = jnp.concatenate([p["wc1a"], p["wc1b"]], axis=0)       # (2E, N)
    wd2p = jnp.pad(p["wd2"], ((0, 0), (0, Vp - V)))             # (N, Vp)

    w_sq = jnp.concatenate(
        [padw(w_eye_out), padw(wc1), padw(p["wc2"]), padw(p["wd1"]), padw(wd2p)],
        axis=0).astype(bf16)

    BW = max(2 * N, W)

    def padrow(a):
        return jnp.pad(a, ((0, 0), (0, BW - a.shape[1])))

    bias = jnp.concatenate([
        padrow(jnp.concatenate([p["b1a"], p["b2a"]], axis=1)),      # row 0
        padrow(jnp.concatenate([p["b1b"], p["b2b"]], axis=1)),      # row 1
        padrow(p["bc1"]),                                           # row 2
        padrow(p["bc2"]),                                           # row 3
        padrow(p["bd1"]),                                           # row 4
        padrow(jnp.pad(p["bd2"], ((0, 0), (0, Vp - V)))),           # row 5
        padrow(jnp.concatenate([p["wa"], p["wa"]], axis=1)),        # row 6
        padrow(p["ba"]),                                            # row 7
    ], axis=0).astype(f32)

    return w_wide, w_sq, bias


def two_eyes_forward(x, params, *, tile_b=128):
    """x: (B, N) float32. params: dict of per-layer weights (in, out) / biases (1, out)."""
    B, N = x.shape
    E = params["w1b"].shape[1]
    V = params["wd2"].shape[1]
    Vp = _round_up(V, 128)

    assert N % 128 == 0, "N must be a multiple of 128 for lane-dense tiles"
    assert (2 * E) % 128 == 0, "2*eye_features must be a multiple of 128"

    w_wide, w_sq, bias = _pack_params(params, N, E, Vp)

    tb = min(tile_b, _round_up(B, 8))
    Bp = _round_up(B, tb)
    x_p = jnp.pad(x, ((0, Bp - B), (0, 0))) if Bp != B else x

    flops = 2 * Bp * (N * 2 * N + 2 * N * 2 * E + 2 * E * N + 2 * N * N + N * Vp)
    bytes_accessed = (x_p.size * 4 + w_wide.size * 2 + w_sq.size * 2
                      + bias.size * 4 + Bp * Vp * 4)

    out = pl.pallas_call(
        _make_kernel(N, E, Vp),
        out_shape=jax.ShapeDtypeStruct((Bp, Vp), jnp.float32),
        grid=(Bp // tb,),
        in_specs=[
            pl.BlockSpec((tb, N), lambda i: (i, 0)),          # x tile (pipelined)
            pl.BlockSpec(w_wide.shape, lambda i: (0, 0)),     # weights stay resident
            pl.BlockSpec(w_sq.shape, lambda i: (0, 0)),
            pl.BlockSpec(bias.shape, lambda i: (0, 0)),
        ],
        out_specs=pl.BlockSpec((tb, Vp), lambda i: (i, 0)),
        compiler_params=pltpu.CompilerParams(
            dimension_semantics=("parallel",),            # megacore on v7x
            vmem_limit_bytes=32 * 1024 * 1024,            # safe on v5e/v6e/v7x
        ),
        cost_estimate=pl.CostEstimate(
            flops=flops, transcendentals=3 * Bp, bytes_accessed=bytes_accessed),
    )(x_p, w_wide, w_sq, bias)
    return out[:B, :V]


def init_params(key, N, E, V):
    """Deterministic small-scale init. Weights stored (in, out); biases (1, out)."""
    ks = jax.random.split(key, 20)
    s = 0.05

    def w(k, shape):
        return jax.random.normal(k, shape, jnp.float32) * s

    return {
        "w1a": w(ks[0], (N, N)),  "b1a": w(ks[1], (1, N)),
        "w1b": w(ks[2], (N, E)),  "b1b": w(ks[3], (1, E)),
        "w2a": w(ks[4], (N, N)),  "b2a": w(ks[5], (1, N)),
        "w2b": w(ks[6], (N, E)),  "b2b": w(ks[7], (1, E)),
        "wa":  w(ks[8], (1, E)),  "ba":  w(ks[9], (1, 1)),
        "wc1a": w(ks[10], (E, N)), "wc1b": w(ks[11], (E, N)), "bc1": w(ks[12], (1, N)),
        "wc2": w(ks[13], (N, N)), "bc2": w(ks[14], (1, N)),
        "wd1": w(ks[15], (N, N)), "bd1": w(ks[16], (1, N)),
        "wd2": w(ks[17], (N, V)), "bd2": w(ks[18], (1, V)),
    }


def reference_forward(x, p):
    """Pure-JAX reference mirroring the kernel's bf16-MXU / f32-accumulate math."""
    bf16, f32 = jnp.bfloat16, jnp.float32
    relu = lambda t: jnp.maximum(t, 0.0)

    def lin(v, w, b):
        return jnp.dot(v.astype(bf16), w.astype(bf16),
                       preferred_element_type=f32) + b

    eye1 = lin(relu(lin(x, p["w1a"], p["b1a"])), p["w1b"], p["b1b"])
    eye2 = lin(relu(lin(x, p["w2a"], p["b2a"])), p["w2b"], p["b2b"])
    a1 = jnp.sum(eye1 * p["wa"], axis=-1, keepdims=True) + p["ba"][0, 0]
    a2 = jnp.sum(eye2 * p["wa"], axis=-1, keepdims=True) + p["ba"][0, 0]
    aw = jax.nn.softmax(jnp.concatenate([a1, a2], axis=1), axis=1)
    eyes = jnp.concatenate([aw[:, 0:1] * eye1, aw[:, 1:2] * eye2], axis=1)
    wc1 = jnp.concatenate([p["wc1a"], p["wc1b"]], axis=0)
    combined = lin(relu(lin(eyes, wc1, p["bc1"])), p["wc2"], p["bc2"])
    z = x + combined
    return lin(relu(lin(z, p["wd1"], p["bd1"])), p["wd2"], p["bd2"])


if __name__ == "__main__":
    # Small (but lane-dense) shapes consistent with the module:
    # N = model width (512 in the script), E = eye_features, V = vocab_size.
    B, N, E, V = 256, 128, 64, 80

    key = jax.random.PRNGKey(0)
    kx, kp = jax.random.split(key)
    x = jax.random.normal(kx, (B, N), jnp.float32)
    params = init_params(kp, N, E, V)

    out = two_eyes_forward(x, params)
    out = jax.block_until_ready(out)

    ref = reference_forward(x, params)
    assert out.shape == (B, V)
    max_err = float(jnp.max(jnp.abs(out - ref)))
    assert jnp.allclose(out, ref, atol=3e-3, rtol=3e-3), f"mismatch vs ref: {max_err}"

    print("KERNEL_OK")
</pallas_src>

<mosaic_0001>
module attributes {stable_mosaic.version = 11 : i64} {
  func.func @kernel(%arg0: i32, %arg1: memref<128x128xf32, #tpu.memory_space<vmem>>, %arg2: memref<128x256xbf16, #tpu.memory_space<vmem>>, %arg3: memref<768x128xbf16, #tpu.memory_space<vmem>>, %arg4: memref<8x256xf32, #tpu.memory_space<vmem>>, %arg5: memref<128x128xf32, #tpu.memory_space<vmem>>) attributes {dimension_semantics = [#tpu.dimension_semantics<parallel>], iteration_bounds = array<i64: 2>, scalar_prefetch = 0 : i64, scratch_operands = 0 : i64, tpu.core_type = #tpu.core_type<tc>, window_params = [{transform_indices = @transform_0, window_bounds = array<i64: 128, 128>}, {pipeline_mode = #tpu.pipeline_mode<synchronous>, transform_indices = @transform_1, window_bounds = array<i64: 128, 256>}, {pipeline_mode = #tpu.pipeline_mode<synchronous>, transform_indices = @transform_2, window_bounds = array<i64: 768, 128>}, {pipeline_mode = #tpu.pipeline_mode<synchronous>, transform_indices = @transform_3, window_bounds = array<i64: 8, 256>}, {transform_indices = @transform_4, window_bounds = array<i64: 128, 128>}]} {
    %c0 = arith.constant 0 : index
    %c0_0 = arith.constant 0 : index
    %0 = vector.load %arg1[%c0, %c0_0] : memref<128x128xf32, #tpu.memory_space<vmem>>, vector<128x128xf32>
    %1 = arith.truncf %0 : vector<128x128xf32> to vector<128x128xbf16>
    %c0_1 = arith.constant 0 : index
    %c0_2 = arith.constant 0 : index
    %2 = vector.load %arg4[%c0_1, %c0_2] : memref<8x256xf32, #tpu.memory_space<vmem>>, vector<1x256xf32>
    %c1 = arith.constant 1 : index
    %c0_3 = arith.constant 0 : index
    %3 = vector.load %arg4[%c1, %c0_3] : memref<8x256xf32, #tpu.memory_space<vmem>>, vector<1x128xf32>
    %c2 = arith.constant 2 : index
    %c0_4 = arith.constant 0 : index
    %4 = vector.load %arg4[%c2, %c0_4] : memref<8x256xf32, #tpu.memory_space<vmem>>, vector<1x128xf32>
    %c3 = arith.constant 3 : index
    %c0_5 = arith.constant 0 : index
    %5 = vector.load %arg4[%c3, %c0_5] : memref<8x256xf32, #tpu.memory_space<vmem>>, vector<1x128xf32>
    %c4 = arith.constant 4 : index
    %c0_6 = arith.constant 0 : index
    %6 = vector.load %arg4[%c4, %c0_6] : memref<8x256xf32, #tpu.memory_space<vmem>>, vector<1x128xf32>
    %c5 = arith.constant 5 : index
    %c0_7 = arith.constant 0 : index
    %7 = vector.load %arg4[%c5, %c0_7] : memref<8x256xf32, #tpu.memory_space<vmem>>, vector<1x128xf32>
    %c6 = arith.constant 6 : index
    %c0_8 = arith.constant 0 : index
    %8 = vector.load %arg4[%c6, %c0_8] : memref<8x256xf32, #tpu.memory_space<vmem>>, vector<1x128xf32>
    %c7 = arith.constant 7 : index
    %c0_9 = arith.constant 0 : index
    %9 = vector.load %arg4[%c7, %c0_9] : memref<8x256xf32, #tpu.memory_space<vmem>>, vector<1x256xf32>
    %10 = vector.extract_strided_slice %9 {offsets = [0, 0], sizes = [1, 1], strides = [1, 1]} : vector<1x256xf32> to vector<1x1xf32>
    %c0_10 = arith.constant 0 : index
    %c0_11 = arith.constant 0 : index
    %11 = vector.load %arg2[%c0_10, %c0_11] : memref<128x256xbf16, #tpu.memory_space<vmem>>, vector<128x256xbf16>
    %cst = arith.constant dense<0.000000e+00> : vector<128x256xf32>
    %12 = tpu.matmul %1, %11, %cst {dimension_numbers = #tpu.dot_dimension_numbers<[1], [0], [0], [1], [0, 0, 1, 1], [], []>} : vector<128x128xbf16>, vector<128x256xbf16>, vector<128x256xf32> -> vector<128x256xf32>
    %13 = vector.broadcast %2 : vector<1x256xf32> to vector<128x256xf32>
    %14 = arith.addf %12, %13 : vector<128x256xf32>
    %cst_12 = arith.constant 0.000000e+00 : f32
    %15 = vector.broadcast %cst_12 : f32 to vector<128x256xf32>
    %16 = arith.maximumf %14, %15 : vector<128x256xf32>
    %17 = arith.truncf %16 : vector<128x256xf32> to vector<128x256xbf16>
    %c0_13 = arith.constant 0 : index
    %c0_14 = arith.constant 0 : index
    %18 = vector.load %arg3[%c0_13, %c0_14] : memref<768x128xbf16, #tpu.memory_space<vmem>>, vector<256x128xbf16>
    %cst_15 = arith.constant dense<0.000000e+00> : vector<128x128xf32>
    %19 = tpu.matmul %17, %18, %cst_15 {dimension_numbers = #tpu.dot_dimension_numbers<[1], [0], [0], [1], [0, 0, 1, 1], [], []>} : vector<128x256xbf16>, vector<256x128xbf16>, vector<128x128xf32> -> vector<128x128xf32>
    %20 = vector.broadcast %3 : vector<1x128xf32> to vector<128x128xf32>
    %21 = arith.addf %19, %20 : vector<128x128xf32>
    %22 = tpu.iota {dimensions = array<i32: 1>} : vector<1x128xi32>
    %c64_i32 = arith.constant 64 : i32
    %23 = vector.broadcast %c64_i32 : i32 to vector<1x128xi32>
    %24 = arith.cmpi slt, %22, %23 : vector<1x128xi32>
    %25 = arith.extui %24 : vector<1x128xi1> to vector<1x128xi32>
    %26 = arith.sitofp %25 : vector<1x128xi32> to vector<1x128xf32>
    %27 = vector.broadcast %8 : vector<1x128xf32> to vector<128x128xf32>
    %28 = arith.mulf %21, %27 : vector<128x128xf32>
    %29 = vector.broadcast %26 : vector<1x128xf32> to vector<128x128xf32>
    %30 = arith.mulf %28, %29 : vector<128x128xf32>
    %cst_16 = arith.constant dense<0.000000e+00> : vector<128xf32>
    %31 = vector.multi_reduction <add>, %30, %cst_16 [1] : vector<128x128xf32> to vector<128xf32>
    %32 = vector.shape_cast %31 : vector<128xf32> to vector<128x1xf32>
    %33 = vector.broadcast %10 : vector<1x1xf32> to vector<128x1xf32>
    %34 = arith.addf %32, %33 : vector<128x1xf32>
    %cst_17 = arith.constant 1.000000e+00 : f32
    %35 = vector.broadcast %cst_17 : f32 to vector<1x128xf32>
    %36 = arith.subf %35, %26 : vector<1x128xf32>
    %37 = vector.broadcast %36 : vector<1x128xf32> to vector<128x128xf32>
    %38 = arith.mulf %28, %37 : vector<128x128xf32>
    %cst_18 = arith.constant dense<0.000000e+00> : vector<128xf32>
    %39 = vector.multi_reduction <add>, %38, %cst_18 [1] : vector<128x128xf32> to vector<128xf32>
    %40 = vector.shape_cast %39 : vector<128xf32> to vector<128x1xf32>
    %41 = vector.broadcast %10 : vector<1x1xf32> to vector<128x1xf32>
    %42 = arith.addf %40, %41 : vector<128x1xf32>
    %43 = arith.maximumf %34, %42 : vector<128x1xf32>
    %44 = arith.subf %34, %43 : vector<128x1xf32>
    %45 = math.exp %44 : vector<128x1xf32>
    %46 = arith.subf %42, %43 : vector<128x1xf32>
    %47 = math.exp %46 : vector<128x1xf32>
    %48 = arith.addf %45, %47 : vector<128x1xf32>
    %49 = tpu.reciprocal %48 {approx = true} : vector<128x1xf32> -> vector<128x1xf32>
    %c64_i32_19 = arith.constant 64 : i32
    %50 = vector.broadcast %c64_i32_19 : i32 to vector<1x128xi32>
    %51 = arith.cmpi slt, %22, %50 : vector<1x128xi32>
    %52 = arith.mulf %45, %49 : vector<128x1xf32>
    %53 = arith.mulf %47, %49 : vector<128x1xf32>
    %54 = vector.shape_cast %51 : vector<1x128xi1> to vector<1x128xi1>
    %55 = vector.broadcast %54 : vector<1x128xi1> to vector<128x128xi1>
    %56 = vector.shape_cast %52 : vector<128x1xf32> to vector<128x1xf32>
    %57 = vector.broadcast %56 : vector<128x1xf32> to vector<128x128xf32>
    %58 = vector.shape_cast %53 : vector<128x1xf32> to vector<128x1xf32>
    %59 = vector.broadcast %58 : vector<128x1xf32> to vector<128x128xf32>
    %60 = arith.select %55, %57, %59 : vector<128x128xi1>, vector<128x128xf32>
    %61 = arith.mulf %21, %60 : vector<128x128xf32>
    %62 = arith.truncf %61 : vector<128x128xf32> to vector<128x128xbf16>
    %c256 = arith.constant 256 : index
    %c0_20 = arith.constant 0 : index
    %63 = vector.load %arg3[%c256, %c0_20] : memref<768x128xbf16, #tpu.memory_space<vmem>>, vector<128x128xbf16>
    %cst_21 = arith.constant dense<0.000000e+00> : vector<128x128xf32>
    %64 = tpu.matmul %62, %63, %cst_21 {dimension_numbers = #tpu.dot_dimension_numbers<[1], [0], [0], [1], [0, 0, 1, 1], [], []>} : vector<128x128xbf16>, vector<128x128xbf16>, vector<128x128xf32> -> vector<128x128xf32>
    %65 = vector.broadcast %4 : vector<1x128xf32> to vector<128x128xf32>
    %66 = arith.addf %64, %65 : vector<128x128xf32>
    %cst_22 = arith.constant 0.000000e+00 : f32
    %67 = vector.broadcast %cst_22 : f32 to vector<128x128xf32>
    %68 = arith.maximumf %66, %67 : vector<128x128xf32>
    %69 = arith.truncf %68 : vector<128x128xf32> to vector<128x128xbf16>
    %c384 = arith.constant 384 : index
    %c0_23 = arith.constant 0 : index
    %70 = vector.load %arg3[%c384, %c0_23] : memref<768x128xbf16, #tpu.memory_space<vmem>>, vector<128x128xbf16>
    %cst_24 = arith.constant dense<0.000000e+00> : vector<128x128xf32>
    %71 = tpu.matmul %69, %70, %cst_24 {dimension_numbers = #tpu.dot_dimension_numbers<[1], [0], [0], [1], [0, 0, 1, 1], [], []>} : vector<128x128xbf16>, vector<128x128xbf16>, vector<128x128xf32> -> vector<128x128xf32>
    %72 = vector.broadcast %5 : vector<1x128xf32> to vector<128x128xf32>
    %73 = arith.addf %71, %72 : vector<128x128xf32>
    %74 = arith.addf %0, %73 : vector<128x128xf32>
    %75 = arith.truncf %74 : vector<128x128xf32> to vector<128x128xbf16>
    %c512 = arith.constant 512 : index
    %c0_25 = arith.constant 0 : index
    %76 = vector.load %arg3[%c512, %c0_25] : memref<768x128xbf16, #tpu.memory_space<vmem>>, vector<128x128xbf16>
    %cst_26 = arith.constant dense<0.000000e+00> : vector<128x128xf32>
    %77 = tpu.matmul %75, %76, %cst_26 {dimension_numbers = #tpu.dot_dimension_numbers<[1], [0], [0], [1], [0, 0, 1, 1], [], []>} : vector<128x128xbf16>, vector<128x128xbf16>, vector<128x128xf32> -> vector<128x128xf32>
    %78 = vector.broadcast %6 : vector<1x128xf32> to vector<128x128xf32>
    %79 = arith.addf %77, %78 : vector<128x128xf32>
    %cst_27 = arith.constant 0.000000e+00 : f32
    %80 = vector.broadcast %cst_27 : f32 to vector<128x128xf32>
    %81 = arith.maximumf %79, %80 : vector<128x128xf32>
    %82 = arith.truncf %81 : vector<128x128xf32> to vector<128x128xbf16>
    %c640 = arith.constant 640 : index
    %c0_28 = arith.constant 0 : index
    %83 = vector.load %arg3[%c640, %c0_28] : memref<768x128xbf16, #tpu.memory_space<vmem>>, vector<128x128xbf16>
    %cst_29 = arith.constant dense<0.000000e+00> : vector<128x128xf32>
    %84 = tpu.matmul %82, %83, %cst_29 {dimension_numbers = #tpu.dot_dimension_numbers<[1], [0], [0], [1], [0, 0, 1, 1], [], []>} : vector<128x128xbf16>, vector<128x128xbf16>, vector<128x128xf32> -> vector<128x128xf32>
    %85 = vector.broadcast %7 : vector<1x128xf32> to vector<128x128xf32>
    %86 = arith.addf %84, %85 : vector<128x128xf32>
    %c0_30 = arith.constant 0 : index
    %c0_31 = arith.constant 0 : index
    %87 = vector.load %arg5[%c0_30, %c0_31] : memref<128x128xf32, #tpu.memory_space<vmem>>, vector<128x128xf32>
    tpu.vector_store %arg5[%c0_30, %c0_31], %86 {strides = array<i32>} : memref<128x128xf32, #tpu.memory_space<vmem>>, vector<128x128xf32>,
    return
  }
  func.func @transform_0(%arg0: i32) -> (i32, i32) {
    %c0_i32 = arith.constant 0 : i32
    %c0_i32_0 = arith.constant 0 : i32
    return %arg0, %c0_i32 : i32, i32
  }
  func.func @transform_1(%arg0: i32) -> (i32, i32) {
    %c0_i32 = arith.constant 0 : i32
    %c0_i32_0 = arith.constant 0 : i32
    %c0_i32_1 = arith.constant 0 : i32
    return %c0_i32, %c0_i32_0 : i32, i32
  }
  func.func @transform_2(%arg0: i32) -> (i32, i32) {
    %c0_i32 = arith.constant 0 : i32
    %c0_i32_0 = arith.constant 0 : i32
    %c0_i32_1 = arith.constant 0 : i32
    return %c0_i32, %c0_i32_0 : i32, i32
  }
  func.func @transform_3(%arg0: i32) -> (i32, i32) {
    %c0_i32 = arith.constant 0 : i32
    %c0_i32_0 = arith.constant 0 : i32
    %c0_i32_1 = arith.constant 0 : i32
    return %c0_i32, %c0_i32_0 : i32, i32
  }
  func.func @transform_4(%arg0: i32) -> (i32, i32) {
    %c0_i32 = arith.constant 0 : i32
    %c0_i32_0 = arith.constant 0 : i32
    return %arg0, %c0_i32 : i32, i32
  }
}

</mosaic_0001>

<llo_original>
// kernel: tpu_custom_call.1
$region0: #{tpu_custom_call.1}
  #allocation0 [shape = 'u32[]', space=smem, size = 0x4, offset = 0x4, fixed_abs, tag = 'smem constant byte address 0x4 - core index']
  #allocation1 [shape = 'u32[144,128]{1,0:T(1,128)}', space=vmem, size = 0x12000, scoped, tag = 'internal scratch']
  %s0 = inlined_call_operand.hbm [shape: f32[256,128], index: 0, kind: input, shape index: {}]
  %s1 = inlined_call_operand.hbm [shape: bf16[128,256], index: 1, kind: input, shape index: {}]
  %s2 = inlined_call_operand.hbm [shape: bf16[768,128], index: 2, kind: input, shape index: {}]
  %s3 = inlined_call_operand.hbm [shape: f32[8,256], index: 3, kind: input, shape index: {}]
  %s4 = inlined_call_operand.hbm [shape: f32[256,128], index: 4, kind: output, shape index: {}]
  %s5 = sld [smem:[#allocation0]]
  $region65: #{tpu_custom_call.1} parent=0
    _
  %s7 = ssub.s32 1, %s5
  %s8 = scalar_select 0, %s7, %s5
  $region1: #{tpu_custom_call.1} parent=0
    #allocation2 [shape = 'u8[131072]{0}', space=vmem, size = 0x20000, scoped, tag = 'input window, operand 0']
    #allocation3 [shape = 's32[2]{0}', space=sflag, size = 0x8, scoped, tag = 'scoped memory for tpu_custom_call.1']
    #allocation4 [shape = 's32[2]{0}', space=sflag, size = 0x8, scoped, tag = 'scoped memory for tpu_custom_call.1']
    #allocation5 [shape = 'u8[65536]{0}', space=vmem, size = 0x10000, scoped, tag = 'input window, operand 1, single buffered']
    #allocation6 [shape = 's32[1]{0}', space=sflag, size = 0x4, scoped, tag = 'scoped memory for tpu_custom_call.1']
    #allocation7 [shape = 'u8[196608]{0}', space=vmem, size = 0x30000, scoped, tag = 'input window, operand 2, single buffered']
    #allocation8 [shape = 'u8[8192]{0}', space=vmem, size = 0x2000, scoped, tag = 'input window, operand 3, single buffered']
    #allocation9 [shape = 's32[1]{0}', space=sflag, size = 0x4, scoped, tag = 'scoped memory for tpu_custom_call.1']
    #allocation10 [shape = 'u8[131072]{0}', space=vmem, size = 0x20000, scoped, tag = 'output window, operand 0']
    %9 = vsyncpa [#allocation3], 0
    %s10 = scalar_lea.sflag [#allocation3], 1
    %11 = vsyncpa %s10, 0
    %12 = vsyncpa [#allocation6], 0
    %13 = vsyncpa [#allocation9], 0
    %14 = vsyncpa [#allocation4], 0
    %s15 = scalar_lea.sflag [#allocation4], 1
    %16 = vsyncpa %s15, 0
    loop: start=0, step=1, limit=4
    $region2: #{tpu_custom_call.1} parent=1 // loop_pre_header
      _
    $region3: #{tpu_custom_call.1} parent=1 // loop_header
      %s18 = sphi 0, %s22
      %p19 = scmp.ge.s32.totalorder %s18, 4
      %s28 = sphi 0, %s30
      %s31 = sphi 0, %s28
      %s32 = sphi 0, %s31
      %s48 = sphi 0, %s32
      %s52 = sphi 0, %s52
      %s54 = sphi 0, %s52
      %s55 = sphi 0, %s54
      %s69 = sphi 0, %s55
      %s73 = sphi 0, %s73
      %s75 = sphi 0, %s73
      %s76 = sphi 0, %s75
      %s90 = sphi 0, %s76
      %s94 = sphi 0, %s94
      %s96 = sphi 0, %s94
      %s97 = sphi 0, %s96
      %s111 = sphi 0, %s97
      %s117 = sphi 0, %s119
      %s120 = sphi 0, %s117
      %s121 = sphi 0, %s120
      %s137 = sphi 0, %s121
    $region4: #{tpu_custom_call.1} parent=1 // loop_header_branch
      %21 = sbr.rel (%p19) target = $region8
    $region5: #{tpu_custom_call.1} parent=1 // loop_body
      %s23 = ssub.s32 %s18, 1
      %s24 = ssub.s32 %s18, 2
      %s25 = sadd.s32 %s18, 1
      %s26 = ssub.s32 %s18, %s25
      %p27 = scmp.eq.s32.totalorder %s26, 0
      %s29 = sadd.s32 %s28, 1
      %s30 = scalar_select %p27, %s28, %s29
      %p33 = pneg %p27
      %p34 = scmp.eq.s32.totalorder %s18, 1
      %p35 = por %p33, %p34
      %p36 = scmp.ne.s32.totalorder %s28, %s31
      %p37 = scmp.eq.s32.totalorder %s18, 0
      %p38 = por %p36, %p37
      %p39 = scmp.ne.s32.totalorder %s28, %s31
      %p40 = scmp.eq.s32.totalorder %s23, 1
      %p41 = por %p39, %p40
      %p42 = scmp.ne.s32.totalorder %s31, %s32
      %p43 = scmp.eq.s32.totalorder %s23, 0
      %p44 = por %p42, %p43
      %p45 = scmp.ne.s32.totalorder %s31, %s32
      %p46 = scmp.eq.s32.totalorder %s24, 1
      %p47 = por %p45, %p46
      %p49 = scmp.ne.s32.totalorder %s32, %s48
      %p50 = scmp.eq.s32.totalorder %s24, 0
      %p51 = por %p49, %p50
      %s53 = sadd.s32 %s52, 1
      %p56 = scmp.eq.s32.totalorder %s18, 1
      %p57 = scmp.ne.s32.totalorder %s52, %s54
      %p58 = scmp.eq.s32.totalorder %s18, 0
      %p59 = por %p57, %p58
      %p60 = scmp.ne.s32.totalorder %s52, %s54
      %p61 = scmp.eq.s32.totalorder %s23, 1
      %p62 = por %p60, %p61
      %p63 = scmp.ne.s32.totalorder %s54, %s55
      %p64 = scmp.eq.s32.totalorder %s23, 0
      %p65 = por %p63, %p64
      %p66 = scmp.ne.s32.totalorder %s54, %s55
      %p67 = scmp.eq.s32.totalorder %s24, 1
      %p68 = por %p66, %p67
      %p70 = scmp.ne.s32.totalorder %s55, %s69
      %p71 = scmp.eq.s32.totalorder %s24, 0
      %p72 = por %p70, %p71
      %s74 = sadd.s32 %s73, 1
      %p77 = scmp.eq.s32.totalorder %s18, 1
      %p78 = scmp.ne.s32.totalorder %s73, %s75
      %p79 = scmp.eq.s32.totalorder %s18, 0
      %p80 = por %p78, %p79
      %p81 = scmp.ne.s32.totalorder %s73, %s75
      %p82 = scmp.eq.s32.totalorder %s23, 1
      %p83 = por %p81, %p82
      %p84 = scmp.ne.s32.totalorder %s75, %s76
      %p85 = scmp.eq.s32.totalorder %s23, 0
      %p86 = por %p84, %p85
      %p87 = scmp.ne.s32.totalorder %s75, %s76
      %p88 = scmp.eq.s32.totalorder %s24, 1
      %p89 = por %p87, %p88
      %p91 = scmp.ne.s32.totalorder %s76, %s90
      %p92 = scmp.eq.s32.totalorder %s24, 0
      %p93 = por %p91, %p92
      %s95 = sadd.s32 %s94, 1
      %p98 = scmp.eq.s32.totalorder %s18, 1
      %p99 = scmp.ne.s32.totalorder %s94, %s96
      %p100 = scmp.eq.s32.totalorder %s18, 0
      %p101 = por %p99, %p100
      %p102 = scmp.ne.s32.totalorder %s94, %s96
      %p103 = scmp.eq.s32.totalorder %s23, 1
      %p104 = por %p102, %p103
      %p105 = scmp.ne.s32.totalorder %s96, %s97
      %p106 = scmp.eq.s32.totalorder %s23, 0
      %p107 = por %p105, %p106
      %p108 = scmp.ne.s32.totalorder %s96, %s97
      %p109 = scmp.eq.s32.totalorder %s24, 1
      %p110 = por %p108, %p109
      %p112 = scmp.ne.s32.totalorder %s97, %s111
      %p113 = scmp.eq.s32.totalorder %s24, 0
      %p114 = por %p112, %p113
      %s115 = ssub.s32 %s18, %s25
      %p116 = scmp.eq.s32.totalorder %s115, 0
      %s118 = sadd.s32 %s117, 1
      %s119 = scalar_select %p116, %s117, %s118
      %p122 = pneg %p116
      %p123 = scmp.eq.s32.totalorder %s18, 1
      %p124 = por %p122, %p123
      %p125 = scmp.ne.s32.totalorder %s117, %s120
      %p126 = scmp.eq.s32.totalorder %s18, 0
      %p127 = por %p125, %p126
      %p128 = scmp.ne.s32.totalorder %s117, %s120
      %p129 = scmp.eq.s32.totalorder %s23, 1
      %p130 = por %p128, %p129
      %p131 = scmp.ne.s32.totalorder %s120, %s121
      %p132 = scmp.eq.s32.totalorder %s23, 0
      %p133 = por %p131, %p132
      %p134 = scmp.ne.s32.totalorder %s120, %s121
      %p135 = scmp.eq.s32.totalorder %s24, 1
      %p136 = por %p134, %p135
      %p138 = scmp.ne.s32.totalorder %s121, %s137
      %p139 = scmp.eq.s32.totalorder %s24, 0
      %p140 = por %p138, %p139
      %p141 = scmp.le.s32.totalorder 1, %s18
      %p142 = scmp.lt.s32.totalorder %s18, 3
      %p143 = pnand %p141, %p142
      %p144 = pneg %p143
      // Predicated region
      $region9: #{tpu_custom_call.1} parent=5 // pred_check
        _
      $region10: #{tpu_custom_call.1} parent=5 // pred_check_branch
        %146 = sbr.rel (%p143) target = $region12
      $region11: #{tpu_custom_call.1} parent=5 // pred_region
        %s147 = ssub.s32 %s18, 1
        // Predicated region
        $region13: #{tpu_custom_call.1} parent=11 // pred_check
          %p148 = pneg %p65
        $region14: #{tpu_custom_call.1} parent=11 // pred_check_branch
          %150 = sbr.rel (%p148) target = $region16
        $region15: #{tpu_custom_call.1} parent=11 // pred_region
          %s152 = ssub.s32 2048, 2048
          %153 = vsyncadd [#allocation6], %s152
          %s154 = sshll.u32 [#allocation5], 4
          %s155 = int_to_ptr.vmem [resolvable:$true] %s154
          %160 = dma.hbm_to_vmem [thread:$0]  %s1, 2048, %s155, [#allocation6], 128, 128, 8
        $region16: #{tpu_custom_call.1} parent=11 // pred_fallthru
          _
        // Predicated region
        $region17: #{tpu_custom_call.1} parent=11 // pred_check
          %p161 = pneg %p86
        $region18: #{tpu_custom_call.1} parent=11 // pred_check_branch
          %163 = sbr.rel (%p161) target = $region20
        $region19: #{tpu_custom_call.1} parent=11 // pred_region
          %s165 = ssub.s32 6144, 6144
          %166 = vsyncadd [#allocation6], %s165
          %s167 = sshll.u32 [#allocation7], 4
          %s168 = int_to_ptr.vmem [resolvable:$true] %s167
          %173 = dma.hbm_to_vmem [thread:$0]  %s2, 6144, %s168, [#allocation6], 64, 64, 4
        $region20: #{tpu_custom_call.1} parent=11 // pred_fallthru
          _
        // Predicated region
        $region21: #{tpu_custom_call.1} parent=11 // pred_check
          %p174 = pneg %p107
        $region22: #{tpu_custom_call.1} parent=11 // pred_check_branch
          %176 = sbr.rel (%p174) target = $region24
        $region23: #{tpu_custom_call.1} parent=11 // pred_region
          %s178 = ssub.s32 256, 256
          %179 = vsyncadd [#allocation9], %s178
          %s181 = sshll.u32 [#allocation8], 4
          %s182 = int_to_ptr.vmem [resolvable:$true] %s181
          %184 = dma.hbm_to_vmem [thread:$0]  %s3, 256, %s182, [#allocation9]
        $region24: #{tpu_custom_call.1} parent=11 // pred_fallthru
          _
      $region12: #{tpu_custom_call.1} parent=5 // pred_fallthru
        _
      %p185 = scmp.lt.s32.totalorder %s18, 2
      // Predicated region
      $region25: #{tpu_custom_call.1} parent=5 // pred_check
        %p186 = pneg %p185
      $region26: #{tpu_custom_call.1} parent=5 // pred_check_branch
        %188 = sbr.rel (%p186) target = $region28
      $region27: #{tpu_custom_call.1} parent=5 // pred_region
        // Predicated region
        $region29: #{tpu_custom_call.1} parent=27 // pred_check
          %p189 = pneg %p38
        $region30: #{tpu_custom_call.1} parent=27 // pred_check_branch
          %191 = sbr.rel (%p189) target = $region32
        $region31: #{tpu_custom_call.1} parent=27 // pred_region
          %s192 = sand.u32 %s28, 1
          %s193 = scalar_lea.sflag [#allocation3], %s192
          %s194 = sand.u32 %s28, 1
          %s195 = smul.addr %s194, 128
          %s196 = scalar_lea.vmem [#allocation2], %s195
          %s197 = smul.u32 16, %s18
          %s199 = ssub.s32 2048, 2048
          %200 = vsyncadd %s193, %s199
          %s201 = smul.addr %s197, 128
          %s202 = scalar_lea.hbm %s0, %s201
          %s203 = sshll.u32 %s196, 4
          %s204 = int_to_ptr.vmem [resolvable:$true] %s203
          %209 = dma.hbm_to_vmem [thread:$0]  %s202, 2048, %s204, %s193, 128, 128, 8
        $region32: #{tpu_custom_call.1} parent=27 // pred_fallthru
          _
      $region28: #{tpu_custom_call.1} parent=5 // pred_fallthru
        _
      %p210 = scmp.le.s32.totalorder 1, %s18
      %p211 = scmp.lt.s32.totalorder %s18, 3
      %p212 = pnand %p210, %p211
      %p213 = pneg %p212
      // Predicated region
      $region33: #{tpu_custom_call.1} parent=5 // pred_check
        _
      $region34: #{tpu_custom_call.1} parent=5 // pred_check_branch
        %215 = sbr.rel (%p212) target = $region36
      $region35: #{tpu_custom_call.1} parent=5 // pred_region
        %s216 = ssub.s32 %s18, 1
        %s217 = sand.u32 %s31, 1
        %s218 = scalar_lea.sflag [#allocation3], %s217
        %s219 = sand.u32 %s31, 1
        %s220 = smul.addr %s219, 128
        %s221 = scalar_lea.vmem [#allocation2], %s220
        // Predicated region
        $region37: #{tpu_custom_call.1} parent=35 // pred_check
          %p222 = pneg %p44
        $region38: #{tpu_custom_call.1} parent=35 // pred_check_branch
          %224 = sbr.rel (%p222) target = $region40
        $region39: #{tpu_custom_call.1} parent=35 // pred_region
          %225 = dma.done %s218, 2048
        $region40: #{tpu_custom_call.1} parent=35 // pred_fallthru
          _
        // Predicated region
        $region41: #{tpu_custom_call.1} parent=35 // pred_check
          %p226 = pneg %p65
        $region42: #{tpu_custom_call.1} parent=35 // pred_check_branch
          %228 = sbr.rel (%p226) target = $region44
        $region43: #{tpu_custom_call.1} parent=35 // pred_region
          %229 = dma.done [#allocation6], 2048
        $region44: #{tpu_custom_call.1} parent=35 // pred_fallthru
          _
        // Predicated region
        $region45: #{tpu_custom_call.1} parent=35 // pred_check
          %p230 = pneg %p86
        $region46: #{tpu_custom_call.1} parent=35 // pred_check_branch
          %232 = sbr.rel (%p230) target = $region48
        $region47: #{tpu_custom_call.1} parent=35 // pred_region
          %233 = dma.done [#allocation6], 6144
        $region48: #{tpu_custom_call.1} parent=35 // pred_fallthru
          _
        // Predicated region
        $region49: #{tpu_custom_call.1} parent=35 // pred_check
          %p234 = pneg %p107
        $region50: #{tpu_custom_call.1} parent=35 // pred_check_branch
          %236 = sbr.rel (%p234) target = $region52
        $region51: #{tpu_custom_call.1} parent=35 // pred_region
          %237 = dma.done [#allocation9], 256
        $region52: #{tpu_custom_call.1} parent=35 // pred_fallthru
          _
        %s238 = sand.u32 %s31, 1
        %s239 = scalar_lea.sflag [#allocation3], %s238
        %s240 = sand.u32 %s31, 1
        %s241 = smul.addr %s240, 128
        %s242 = scalar_lea.vmem [#allocation2], %s241
        %p243 = pneg %p44
        %p244 = pneg %p41
        %p245 = pneg %p65
        %p246 = pneg %p62
        %p247 = pneg %p86
        %p248 = pneg %p83
        %p249 = pneg %p107
        %p250 = pneg %p104
        %p251 = pneg %p133
        %p252 = pneg %p130
        %s253 = sand.u32 %s120, 1
        %s254 = scalar_lea.sflag [#allocation4], %s253
        %s255 = sand.u32 %s120, 1
        %s256 = smul.addr %s255, 128
        %s257 = scalar_lea.vmem [#allocation10], %s256
        %s258 = smul.u32 16, %s23
        %s259 = smul.u32 16, %s23
        %v261 = vld [vmem:[%s221] sm:$0xff]
        %v262 = vld [vmem:[%s221 + $0x8] sm:$0xff]
        %v263 = vld [vmem:[%s221 + $0x10] sm:$0xff]
        %v264 = vld [vmem:[%s221 + $0x18] sm:$0xff]
        %v265 = vld [vmem:[%s221 + $0x20] sm:$0xff]
        %v266 = vld [vmem:[%s221 + $0x28] sm:$0xff]
        %v267 = vld [vmem:[%s221 + $0x30] sm:$0xff]
        %v268 = vld [vmem:[%s221 + $0x38] sm:$0xff]
        %v269 = vld [vmem:[%s221 + $0x40] sm:$0xff]
        %v270 = vld [vmem:[%s221 + $0x48] sm:$0xff]
        %v271 = vld [vmem:[%s221 + $0x50] sm:$0xff]
        %v272 = vld [vmem:[%s221 + $0x58] sm:$0xff]
        %v273 = vld [vmem:[%s221 + $0x60] sm:$0xff]
        %v274 = vld [vmem:[%s221 + $0x68] sm:$0xff]
        %v275 = vld [vmem:[%s221 + $0x70] sm:$0xff]
        %v276 = vld [vmem:[%s221 + $0x78] sm:$0xff]
        %v277 = vpack.c.bf16 %v262, %v261
        %v278 = vpack.c.bf16 %v264, %v263
        %v279 = vpack.c.bf16 %v266, %v265
        %v280 = vpack.c.bf16 %v268, %v267
        %v281 = vpack.c.bf16 %v270, %v269
        %v282 = vpack.c.bf16 %v272, %v271
        %v283 = vpack.c.bf16 %v274, %v273
        %v284 = vpack.c.bf16 %v276, %v275
        %v285 = vld [vmem:[#allocation8] ss:$8 sm:$0x3]
        %v286 = vld [vmem:[#allocation8 + $0x1] ss:$0 sm:$0xff]
        %v287 = vld [vmem:[#allocation8 + $0x2] ss:$0 sm:$0xff]
        %v288 = vld [vmem:[#allocation8 + $0x3] ss:$0 sm:$0xff]
        %v289 = vld [vmem:[#allocation8 + $0x4] ss:$0 sm:$0xff]
        %v290 = vld [vmem:[#allocation8 + $0x5] ss:$0 sm:$0xff]
        %v291 = vld [vmem:[#allocation8 + $0x6] ss:$0 sm:$0xff]
        %s292 = scalar_lea.vmem [#allocation8], 7
        %v293 = vld [vmem:[%s292] ss:$8 sm:$0x3]
        %v294 = vld [vmem:[#allocation5] sm:$0xff]
        %v295 = vld [vmem:[#allocation5 + $0x8] sm:$0xff]
        %v296 = vld [vmem:[#allocation5 + $0x10] sm:$0xff]
        %v297 = vld [vmem:[#allocation5 + $0x18] sm:$0xff]
        %v298 = vld [vmem:[#allocation5 + $0x20] sm:$0xff]
        %v299 = vld [vmem:[#allocation5 + $0x28] sm:$0xff]
        %v300 = vld [vmem:[#allocation5 + $0x30] sm:$0xff]
        %v301 = vld [vmem:[#allocation5 + $0x38] sm:$0xff]
        %v302 = vld [vmem:[#allocation5 + $0x40] sm:$0xff]
        %v303 = vld [vmem:[#allocation5 + $0x48] sm:$0xff]
        %v304 = vld [vmem:[#allocation5 + $0x50] sm:$0xff]
        %v305 = vld [vmem:[#allocation5 + $0x58] sm:$0xff]
        %v306 = vld [vmem:[#allocation5 + $0x60] sm:$0xff]
        %v307 = vld [vmem:[#allocation5 + $0x68] sm:$0xff]
        %v308 = vld [vmem:[#allocation5 + $0x70] sm:$0xff]
        %v309 = vld [vmem:[#allocation5 + $0x78] sm:$0xff]
        %v311 = vlaneseq
        %v312 = vshrl.u32 %v311, 7
        %v313 = vsub.s32 0, %v312
        %v314 = vrot.slane %v285, %v313
        %v315 = vlaneseq
        %v316 = vshrl.u32 %v315, 7
        %v317 = vsub.s32 1, %v316
        %v318 = vrot.slane %v285, %v317
        %v337 = vunpack.c.l.b16 %v294
        %v338 = vunpack.c.h.b16 %v294
        %v339 = vunpack.c.l.b16 %v295
        %v340 = vunpack.c.h.b16 %v295
        %v341 = vunpack.c.l.b16 %v296
        %v342 = vunpack.c.h.b16 %v296
        %v343 = vunpack.c.l.b16 %v297
        %v344 = vunpack.c.h.b16 %v297
        %v345 = vunpack.c.l.b16 %v298
        %v346 = vunpack.c.h.b16 %v298
        %v347 = vunpack.c.l.b16 %v299
        %v348 = vunpack.c.h.b16 %v299
        %v349 = vunpack.c.l.b16 %v300
        %v350 = vunpack.c.h.b16 %v300
        %v351 = vunpack.c.l.b16 %v301
        %v352 = vunpack.c.h.b16 %v301
        %v353 = vunpack.c.l.b16 %v302
        %v354 = vunpack.c.h.b16 %v302
        %v355 = vunpack.c.l.b16 %v303
        %v356 = vunpack.c.h.b16 %v303
        %v357 = vunpack.c.l.b16 %v304
        %v358 = vunpack.c.h.b16 %v304
        %v359 = vunpack.c.l.b16 %v305
        %v360 = vunpack.c.h.b16 %v305
        %v361 = vunpack.c.l.b16 %v306
        %v362 = vunpack.c.h.b16 %v306
        %v363 = vunpack.c.l.b16 %v307
        %v364 = vunpack.c.h.b16 %v307
        %v365 = vunpack.c.l.b16 %v308
        %v366 = vunpack.c.h.b16 %v308
        %v367 = vunpack.c.l.b16 %v309
        %v368 = vunpack.c.h.b16 %v309
        %v369 = vpack.c.b16 %v339, %v337
        %v370 = vpack.c.b16 %v340, %v338
        %v371 = vpack.c.b16 %v343, %v341
        %v372 = vpack.c.b16 %v344, %v342
        %v373 = vpack.c.b16 %v347, %v345
        %v374 = vpack.c.b16 %v348, %v346
        %v375 = vpack.c.b16 %v351, %v349
        %v376 = vpack.c.b16 %v352, %v350
        %v377 = vpack.c.b16 %v355, %v353
        %v378 = vpack.c.b16 %v356, %v354
        %v379 = vpack.c.b16 %v359, %v357
        %v380 = vpack.c.b16 %v360, %v358
        %v381 = vpack.c.b16 %v363, %v361
        %v382 = vpack.c.b16 %v364, %v362
        %v383 = vpack.c.b16 %v367, %v365
        %v384 = vpack.c.b16 %v368, %v366
        %401 = vmatprep.subr.bf16.mxu0 %v384
        %402 = vmatpush1.bf16.msra.mxu0 %v383
        %403 = vmatprep.subr.bf16.mxu0 %v382
        %404 = vmatpush1.bf16.msra.mxu0 %v381
        %405 = vmatprep.subr.bf16.mxu0 %v380
        %406 = vmatpush1.bf16.msra.mxu0 %v379
        %407 = vmatprep.subr.bf16.mxu0 %v378
        %408 = vmatpush1.bf16.msra.mxu0 %v377
        %409 = vmatprep.subr.bf16.mxu0 %v376
        %410 = vmatpush1.bf16.msra.mxu0 %v375
        %411 = vmatprep.subr.bf16.mxu0 %v374
        %412 = vmatpush1.bf16.msra.mxu0 %v373
        %413 = vmatprep.subr.bf16.mxu0 %v372
        %414 = vmatpush1.bf16.msra.mxu0 %v371
        %415 = vmatprep.subr.bf16.mxu0 %v370
        %416 = vmatpush1.bf16.msra.mxu0 %v369
        %417 = vmatprep.subr.bf16.mxu0 0
        %418 = vmatpush2.bf16.msra.mxu0 0
        %419 = vmatprep.subr.bf16.mxu0 0
        %420 = vmatpush2.bf16.msra.mxu0 0
        %421 = vmatprep.subr.bf16.mxu0 0
        %422 = vmatpush2.bf16.msra.mxu0 0
        %423 = vmatprep.subr.bf16.mxu0 0
        %424 = vmatpush2.bf16.msra.mxu0 0
        %425 = vmatprep.subr.bf16.mxu0 0
        %426 = vmatpush2.bf16.msra.mxu0 0
        %427 = vmatprep.subr.bf16.mxu0 0
        %428 = vmatpush2.bf16.msra.mxu0 0
        %429 = vmatprep.subr.bf16.mxu0 0
        %430 = vmatpush2.bf16.msra.mxu0 0
        %431 = vmatprep.subr.bf16.mxu0 0
        %432 = vmatpush2.bf16.msra.mxu0 0
        %433 = vmatprep.mubr.bf16.mxu0 0
        %434 = vmatmul.mubr.bf16.gmra.mxu0 %v277
        %v435 = vpop.f32.mrf.mxu0
        %v436 = vadd.f32 %v314, %v435
        %v437 = vpop.f32.mrf.mxu0
        %v438 = vadd.f32 %v318, %v437
        %v439 = vpop.f32.mrf.mxu0
        %v440 = vadd.f32 %v314, %v439
        %v441 = vpop.f32.mrf.mxu0
        %v442 = vadd.f32 %v318, %v441
        %443 = vmatprep.mubr.bf16.mxu0 0
        %444 = vmatmul.mubr.bf16.gmra.mxu0 %v278
        %v445 = vpop.f32.mrf.mxu0
        %v446 = vadd.f32 %v314, %v445
        %v447 = vpop.f32.mrf.mxu0
        %v448 = vadd.f32 %v318, %v447
        %v449 = vpop.f32.mrf.mxu0
        %v450 = vadd.f32 %v314, %v449
        %v451 = vpop.f32.mrf.mxu0
        %v452 = vadd.f32 %v318, %v451
        %453 = vmatprep.mubr.bf16.mxu0 0
        %454 = vmatmul.mubr.bf16.gmra.mxu0 %v279
        %v455 = vpop.f32.mrf.mxu0
        %v456 = vadd.f32 %v314, %v455
        %v457 = vpop.f32.mrf.mxu0
        %v458 = vadd.f32 %v318, %v457
        %v459 = vpop.f32.mrf.mxu0
        %v460 = vadd.f32 %v314, %v459
        %v461 = vpop.f32.mrf.mxu0
        %v462 = vadd.f32 %v318, %v461
        %463 = vmatprep.mubr.bf16.mxu0 0
        %464 = vmatmul.mubr.bf16.gmra.mxu0 %v280
        %v465 = vpop.f32.mrf.mxu0
        %v466 = vadd.f32 %v314, %v465
        %v467 = vpop.f32.mrf.mxu0
        %v468 = vadd.f32 %v318, %v467
        %v469 = vpop.f32.mrf.mxu0
        %v470 = vadd.f32 %v314, %v469
        %v471 = vpop.f32.mrf.mxu0
        %v472 = vadd.f32 %v318, %v471
        %473 = vmatprep.mubr.bf16.mxu0 0
        %474 = vmatmul.mubr.bf16.gmra.mxu0 %v281
        %v475 = vpop.f32.mrf.mxu0
        %v476 = vadd.f32 %v314, %v475
        %v477 = vpop.f32.mrf.mxu0
        %v478 = vadd.f32 %v318, %v477
        %v479 = vpop.f32.mrf.mxu0
        %v480 = vadd.f32 %v314, %v479
        %v481 = vpop.f32.mrf.mxu0
        %v482 = vadd.f32 %v318, %v481
        %483 = vmatprep.mubr.bf16.mxu0 0
        %484 = vmatmul.mubr.bf16.gmra.mxu0 %v282
        %v485 = vpop.f32.mrf.mxu0
        %v486 = vadd.f32 %v314, %v485
        %v487 = vpop.f32.mrf.mxu0
        %v488 = vadd.f32 %v318, %v487
        %v489 = vpop.f32.mrf.mxu0
        %v490 = vadd.f32 %v314, %v489
        %v491 = vpop.f32.mrf.mxu0
        %v492 = vadd.f32 %v318, %v491
        %493 = vmatprep.mubr.bf16.mxu0 0
        %494 = vmatmul.mubr.bf16.gmra.mxu0 %v283
        %v495 = vpop.f32.mrf.mxu0
        %v496 = vadd.f32 %v314, %v495
        %v497 = vpop.f32.mrf.mxu0
        %v498 = vadd.f32 %v318, %v497
        %v499 = vpop.f32.mrf.mxu0
        %v500 = vadd.f32 %v314, %v499
        %v501 = vpop.f32.mrf.mxu0
        %v502 = vadd.f32 %v318, %v501
        %503 = vmatprep.mubr.bf16.mxu0 0
        %504 = vmatmul.mubr.bf16.gmra.mxu0 %v284
        %v505 = vpop.f32.mrf.mxu0
        %v506 = vadd.f32 %v314, %v505
        %v507 = vpop.f32.mrf.mxu0
        %v508 = vadd.f32 %v318, %v507
        %v509 = vpop.f32.mrf.mxu0
        %v510 = vadd.f32 %v314, %v509
        %v511 = vpop.f32.mrf.mxu0
        %v512 = vadd.f32 %v318, %v511
        %513 = vdwg.mxu0
        %v514 = vmax.f32 %v436, 0.0
        %v515 = vmax.f32 %v438, 0.0
        %v516 = vmax.f32 %v440, 0.0
        %v517 = vmax.f32 %v442, 0.0
        %v518 = vmax.f32 %v446, 0.0
        %v519 = vmax.f32 %v448, 0.0
        %v520 = vmax.f32 %v450, 0.0
        %v521 = vmax.f32 %v452, 0.0
        %v522 = vmax.f32 %v456, 0.0
        %v523 = vmax.f32 %v458, 0.0
        %v524 = vmax.f32 %v460, 0.0
        %v525 = vmax.f32 %v462, 0.0
        %v526 = vmax.f32 %v466, 0.0
        %v527 = vmax.f32 %v468, 0.0
        %v528 = vmax.f32 %v470, 0.0
        %v529 = vmax.f32 %v472, 0.0
        %v530 = vmax.f32 %v476, 0.0
        %v531 = vmax.f32 %v478, 0.0
        %v532 = vmax.f32 %v480, 0.0
        %v533 = vmax.f32 %v482, 0.0
        %v534 = vmax.f32 %v486, 0.0
        %v535 = vmax.f32 %v488, 0.0
        %v536 = vmax.f32 %v490, 0.0
        %v537 = vmax.f32 %v492, 0.0
        %v538 = vmax.f32 %v496, 0.0
        %v539 = vmax.f32 %v498, 0.0
        %v540 = vmax.f32 %v500, 0.0
        %v541 = vmax.f32 %v502, 0.0
        %v542 = vmax.f32 %v506, 0.0
        %v543 = vmax.f32 %v508, 0.0
        %v544 = vmax.f32 %v510, 0.0
        %v545 = vmax.f32 %v512, 0.0
        %v546 = vpack.c.bf16 %v516, %v514
        %v547 = vpack.c.bf16 %v517, %v515
        %v548 = vpack.c.bf16 %v520, %v518
        %v549 = vpack.c.bf16 %v521, %v519
        %v550 = vpack.c.bf16 %v524, %v522
        %v551 = vpack.c.bf16 %v525, %v523
        %v552 = vpack.c.bf16 %v528, %v526
        %v553 = vpack.c.bf16 %v529, %v527
        %v554 = vpack.c.bf16 %v532, %v530
        %v555 = vpack.c.bf16 %v533, %v531
        %v556 = vpack.c.bf16 %v536, %v534
        %v557 = vpack.c.bf16 %v537, %v535
        %v558 = vpack.c.bf16 %v540, %v538
        %v559 = vpack.c.bf16 %v541, %v539
        %v560 = vpack.c.bf16 %v544, %v542
        %v561 = vpack.c.bf16 %v545, %v543
        %v562 = vld [vmem:[#allocation7] sm:$0xf]
        %v563 = vld [vmem:[#allocation7 + $0x4] sm:$0xf]
        %v564 = vld [vmem:[#allocation7 + $0x8] sm:$0xf]
        %v565 = vld [vmem:[#allocation7 + $0xc] sm:$0xf]
        %v566 = vld [vmem:[#allocation7 + $0x10] sm:$0xf]
        %v567 = vld [vmem:[#allocation7 + $0x14] sm:$0xf]
        %v568 = vld [vmem:[#allocation7 + $0x18] sm:$0xf]
        %v569 = vld [vmem:[#allocation7 + $0x1c] sm:$0xf]
        %v570 = vld [vmem:[#allocation7 + $0x20] sm:$0xf]
        %v571 = vld [vmem:[#allocation7 + $0x24] sm:$0xf]
        %v572 = vld [vmem:[#allocation7 + $0x28] sm:$0xf]
        %v573 = vld [vmem:[#allocation7 + $0x2c] sm:$0xf]
        %v574 = vld [vmem:[#allocation7 + $0x30] sm:$0xf]
        %v575 = vld [vmem:[#allocation7 + $0x34] sm:$0xf]
        %v576 = vld [vmem:[#allocation7 + $0x38] sm:$0xf]
        %v577 = vld [vmem:[#allocation7 + $0x3c] sm:$0xf]
        %v578 = vld [vmem:[#allocation7 + $0x40] sm:$0xf]
        %v579 = vld [vmem:[#allocation7 + $0x44] sm:$0xf]
        %v580 = vld [vmem:[#allocation7 + $0x48] sm:$0xf]
        %v581 = vld [vmem:[#allocation7 + $0x4c] sm:$0xf]
        %v582 = vld [vmem:[#allocation7 + $0x50] sm:$0xf]
        %v583 = vld [vmem:[#allocation7 + $0x54] sm:$0xf]
        %v584 = vld [vmem:[#allocation7 + $0x58] sm:$0xf]
        %v585 = vld [vmem:[#allocation7 + $0x5c] sm:$0xf]
        %v586 = vld [vmem:[#allocation7 + $0x60] sm:$0xf]
        %v587 = vld [vmem:[#allocation7 + $0x64] sm:$0xf]
        %v588 = vld [vmem:[#allocation7 + $0x68] sm:$0xf]
        %v589 = vld [vmem:[#allocation7 + $0x6c] sm:$0xf]
        %v590 = vld [vmem:[#allocation7 + $0x70] sm:$0xf]
        %v591 = vld [vmem:[#allocation7 + $0x74] sm:$0xf]
        %v592 = vld [vmem:[#allocation7 + $0x78] sm:$0xf]
        %v593 = vld [vmem:[#allocation7 + $0x7c] sm:$0xf]
        %v626 = vunpack.c.l.b16 %v562
        %v627 = vunpack.c.l.b16 %v563
        %v628 = vunpack.c.l.b16 %v564
        %v629 = vunpack.c.l.b16 %v565
        %v630 = vunpack.c.l.b16 %v566
        %v631 = vunpack.c.l.b16 %v567
        %v632 = vunpack.c.l.b16 %v568
        %v633 = vunpack.c.l.b16 %v569
        %v634 = vunpack.c.l.b16 %v570
        %v635 = vunpack.c.l.b16 %v571
        %v636 = vunpack.c.l.b16 %v572
        %v637 = vunpack.c.l.b16 %v573
        %v638 = vunpack.c.l.b16 %v574
        %v639 = vunpack.c.l.b16 %v575
        %v640 = vunpack.c.l.b16 %v576
        %v641 = vunpack.c.l.b16 %v577
        %v642 = vunpack.c.l.b16 %v578
        %v643 = vunpack.c.l.b16 %v579
        %v644 = vunpack.c.l.b16 %v580
        %v645 = vunpack.c.l.b16 %v581
        %v646 = vunpack.c.l.b16 %v582
        %v647 = vunpack.c.l.b16 %v583
        %v648 = vunpack.c.l.b16 %v584
        %v649 = vunpack.c.l.b16 %v585
        %v650 = vunpack.c.l.b16 %v586
        %v651 = vunpack.c.l.b16 %v587
        %v652 = vunpack.c.l.b16 %v588
        %v653 = vunpack.c.l.b16 %v589
        %v654 = vunpack.c.l.b16 %v590
        %v655 = vunpack.c.l.b16 %v591
        %v656 = vunpack.c.l.b16 %v592
        %v657 = vunpack.c.l.b16 %v593
        %v658 = vpack.c.b16 %v627, %v626
        %v659 = vpack.c.b16 %v629, %v628
        %v660 = vpack.c.b16 %v631, %v630
        %v661 = vpack.c.b16 %v633, %v632
        %v662 = vpack.c.b16 %v635, %v634
        %v663 = vpack.c.b16 %v637, %v636
        %v664 = vpack.c.b16 %v639, %v638
        %v665 = vpack.c.b16 %v641, %v640
        %v666 = vpack.c.b16 %v643, %v642
        %v667 = vpack.c.b16 %v645, %v644
        %v668 = vpack.c.b16 %v647, %v646
        %v669 = vpack.c.b16 %v649, %v648
        %v670 = vpack.c.b16 %v651, %v650
        %v671 = vpack.c.b16 %v653, %v652
        %v672 = vpack.c.b16 %v655, %v654
        %v673 = vpack.c.b16 %v657, %v656
        %690 = vmatprep.subr.bf16.mxu0 0
        %691 = vmatpush1.bf16.msra.mxu0 %v665
        %692 = vmatprep.subr.bf16.mxu0 0
        %693 = vmatpush1.bf16.msra.mxu0 %v664
        %694 = vmatprep.subr.bf16.mxu0 0
        %695 = vmatpush1.bf16.msra.mxu0 %v663
        %696 = vmatprep.subr.bf16.mxu0 0
        %697 = vmatpush1.bf16.msra.mxu0 %v662
        %698 = vmatprep.subr.bf16.mxu0 0
        %699 = vmatpush1.bf16.msra.mxu0 %v661
        %700 = vmatprep.subr.bf16.mxu0 0
        %701 = vmatpush1.bf16.msra.mxu0 %v660
        %702 = vmatprep.subr.bf16.mxu0 0
        %703 = vmatpush1.bf16.msra.mxu0 %v659
        %704 = vmatprep.subr.bf16.mxu0 0
        %705 = vmatpush1.bf16.msra.mxu0 %v658
        %706 = vmatprep.subr.bf16.mxu0 0
        %707 = vmatpush2.bf16.msra.mxu0 %v673
        %708 = vmatprep.subr.bf16.mxu0 0
        %709 = vmatpush2.bf16.msra.mxu0 %v672
        %710 = vmatprep.subr.bf16.mxu0 0
        %711 = vmatpush2.bf16.msra.mxu0 %v671
        %712 = vmatprep.subr.bf16.mxu0 0
        %713 = vmatpush2.bf16.msra.mxu0 %v670
        %714 = vmatprep.subr.bf16.mxu0 0
        %715 = vmatpush2.bf16.msra.mxu0 %v669
        %716 = vmatprep.subr.bf16.mxu0 0
        %717 = vmatpush2.bf16.msra.mxu0 %v668
        %718 = vmatprep.subr.bf16.mxu0 0
        %719 = vmatpush2.bf16.msra.mxu0 %v667
        %720 = vmatprep.subr.bf16.mxu0 0
        %721 = vmatpush2.bf16.msra.mxu0 %v666
        %722 = vmatprep.mubr.bf16.mxu0 %v547
        %723 = vmatmul.mubr.bf16.gmra.mxu0 %v546
        %v724 = vpop.f32.mrf.mxu0
        %v725 = vadd.f32 %v286, %v724
        %v726 = vpop.f32.mrf.mxu0
        %v727 = vpop.f32.mrf.mxu0
        %v728 = vadd.f32 %v286, %v727
        %v729 = vpop.f32.mrf.mxu0
        %730 = vmatprep.mubr.bf16.mxu0 %v549
        %731 = vmatmul.mubr.bf16.gmra.mxu0 %v548
        %v732 = vpop.f32.mrf.mxu0
        %v733 = vadd.f32 %v286, %v732
        %v734 = vpop.f32.mrf.mxu0
        %v735 = vpop.f32.mrf.mxu0
        %v736 = vadd.f32 %v286, %v735
        %v737 = vpop.f32.mrf.mxu0
        %738 = vmatprep.mubr.bf16.mxu0 %v551
        %739 = vmatmul.mubr.bf16.gmra.mxu0 %v550
        %v740 = vpop.f32.mrf.mxu0
        %v741 = vadd.f32 %v286, %v740
        %v742 = vpop.f32.mrf.mxu0
        %v743 = vpop.f32.mrf.mxu0
        %v744 = vadd.f32 %v286, %v743
        %v745 = vpop.f32.mrf.mxu0
        %746 = vmatprep.mubr.bf16.mxu0 %v553
        %747 = vmatmul.mubr.bf16.gmra.mxu0 %v552
        %v748 = vpop.f32.mrf.mxu0
        %v749 = vadd.f32 %v286, %v748
        %v750 = vpop.f32.mrf.mxu0
        %v751 = vpop.f32.mrf.mxu0
        %v752 = vadd.f32 %v286, %v751
        %v753 = vpop.f32.mrf.mxu0
        %754 = vmatprep.mubr.bf16.mxu0 %v555
        %755 = vmatmul.mubr.bf16.gmra.mxu0 %v554
        %v756 = vpop.f32.mrf.mxu0
        %v757 = vadd.f32 %v286, %v756
        %v758 = vpop.f32.mrf.mxu0
        %v759 = vpop.f32.mrf.mxu0
        %v760 = vadd.f32 %v286, %v759
        %v761 = vpop.f32.mrf.mxu0
        %762 = vmatprep.mubr.bf16.mxu0 %v557
        %763 = vmatmul.mubr.bf16.gmra.mxu0 %v556
        %v764 = vpop.f32.mrf.mxu0
        %v765 = vadd.f32 %v286, %v764
        %v766 = vpop.f32.mrf.mxu0
        %v767 = vpop.f32.mrf.mxu0
        %v768 = vadd.f32 %v286, %v767
        %v769 = vpop.f32.mrf.mxu0
        %770 = vmatprep.mubr.bf16.mxu0 %v559
        %771 = vmatmul.mubr.bf16.gmra.mxu0 %v558
        %v772 = vpop.f32.mrf.mxu0
        %v773 = vadd.f32 %v286, %v772
        %v774 = vpop.f32.mrf.mxu0
        %v775 = vpop.f32.mrf.mxu0
        %v776 = vadd.f32 %v286, %v775
        %v777 = vpop.f32.mrf.mxu0
        %778 = vmatprep.mubr.bf16.mxu0 %v561
        %779 = vmatmul.mubr.bf16.gmra.mxu0 %v560
        %v780 = vpop.f32.mrf.mxu0
        %v781 = vadd.f32 %v286, %v780
        %v782 = vpop.f32.mrf.mxu0
        %v783 = vpop.f32.mrf.mxu0
        %v784 = vadd.f32 %v286, %v783
        %v785 = vpop.f32.mrf.mxu0
        %786 = vdwg.mxu0
        %v787 = vlaneseq
        %v788 = vand.u32 %v787, 127
        %vm789 = vcmp.lt.s32.totalorder %v788, 64
        %v790 = vsel %vm789, 1, 0
        %v791 = vcvt.s32.f32 %v790
        %v792 = vmul.f32 %v725, %v291
        %v793 = vmul.f32 %v728, %v291
        %v794 = vmul.f32 %v733, %v291
        %v795 = vmul.f32 %v736, %v291
        %v796 = vmul.f32 %v741, %v291
        %v797 = vmul.f32 %v744, %v291
        %v798 = vmul.f32 %v749, %v291
        %v799 = vmul.f32 %v752, %v291
        %v800 = vmul.f32 %v757, %v291
        %v801 = vmul.f32 %v760, %v291
        %v802 = vmul.f32 %v765, %v291
        %v803 = vmul.f32 %v768, %v291
        %v804 = vmul.f32 %v773, %v291
        %v805 = vmul.f32 %v776, %v291
        %v806 = vmul.f32 %v781, %v291
        %v807 = vmul.f32 %v784, %v291
        %v808 = vmul.f32 %v792, %v791
        %v809 = vmul.f32 %v793, %v791
        %v810 = vmul.f32 %v794, %v791
        %v811 = vmul.f32 %v795, %v791
        %v812 = vmul.f32 %v796, %v791
        %v813 = vmul.f32 %v797, %v791
        %v814 = vmul.f32 %v798, %v791
        %v815 = vmul.f32 %v799, %v791
        %v816 = vmul.f32 %v800, %v791
        %v817 = vmul.f32 %v801, %v791
        %v818 = vmul.f32 %v802, %v791
        %v819 = vmul.f32 %v803, %v791
        %v820 = vmul.f32 %v804, %v791
        %v821 = vmul.f32 %v805, %v791
        %v822 = vmul.f32 %v806, %v791
        %v823 = vmul.f32 %v807, %v791
        %824 = vadd.xlane.f32.xlu0 %v808
        %v825 = vpop.xlane.xlu0 %824
        %826 = vadd.xlane.f32.xlu0 %v809
        %v827 = vpop.xlane.xlu0 %826
        %828 = vadd.xlane.f32.xlu0 %v810
        %v829 = vpop.xlane.xlu0 %828
        %830 = vadd.xlane.f32.xlu0 %v811
        %v831 = vpop.xlane.xlu0 %830
        %832 = vadd.xlane.f32.xlu0 %v812
        %v833 = vpop.xlane.xlu0 %832
        %834 = vadd.xlane.f32.xlu0 %v813
        %v835 = vpop.xlane.xlu0 %834
        %836 = vadd.xlane.f32.xlu0 %v814
        %v837 = vpop.xlane.xlu0 %836
        %838 = vadd.xlane.f32.xlu0 %v815
        %v839 = vpop.xlane.xlu0 %838
        %840 = vadd.xlane.f32.xlu0 %v816
        %v841 = vpop.xlane.xlu0 %840
        %842 = vadd.xlane.f32.xlu0 %v817
        %v843 = vpop.xlane.xlu0 %842
        %844 = vadd.xlane.f32.xlu0 %v818
        %v845 = vpop.xlane.xlu0 %844
        %846 = vadd.xlane.f32.xlu0 %v819
        %v847 = vpop.xlane.xlu0 %846
        %848 = vadd.xlane.f32.xlu0 %v820
        %v849 = vpop.xlane.xlu0 %848
        %850 = vadd.xlane.f32.xlu0 %v821
        %v851 = vpop.xlane.xlu0 %850
        %852 = vadd.xlane.f32.xlu0 %v822
        %v853 = vpop.xlane.xlu0 %852
        %854 = vadd.xlane.f32.xlu0 %v823
        %v855 = vpop.xlane.xlu0 %854
        %v857 = vlaneseq
        %v858 = vshrl.u32 %v857, 7
        %v859 = vsub.s32 0, %v858
        %v860 = vrot.slane %v293, %v859
        %v862 = vadd.f32 %v825, %v860
        %v863 = vadd.f32 %v827, %v860
        %v864 = vadd.f32 %v829, %v860
        %v865 = vadd.f32 %v831, %v860
        %v866 = vadd.f32 %v833, %v860
        %v867 = vadd.f32 %v835, %v860
        %v868 = vadd.f32 %v837, %v860
        %v869 = vadd.f32 %v839, %v860
        %v870 = vadd.f32 %v841, %v860
        %v871 = vadd.f32 %v843, %v860
        %v872 = vadd.f32 %v845, %v860
        %v873 = vadd.f32 %v847, %v860
        %v874 = vadd.f32 %v849, %v860
        %v875 = vadd.f32 %v851, %v860
        %v876 = vadd.f32 %v853, %v860
        %v877 = vadd.f32 %v855, %v860
        %v878 = vsub.f32 1.0, %v791
        %v879 = vmul.f32 %v792, %v878
        %v880 = vmul.f32 %v793, %v878
        %v881 = vmul.f32 %v794, %v878
        %v882 = vmul.f32 %v795, %v878
        %v883 = vmul.f32 %v796, %v878
        %v884 = vmul.f32 %v797, %v878
        %v885 = vmul.f32 %v798, %v878
        %v886 = vmul.f32 %v799, %v878
        %v887 = vmul.f32 %v800, %v878
        %v888 = vmul.f32 %v801, %v878
        %v889 = vmul.f32 %v802, %v878
        %v890 = vmul.f32 %v803, %v878
        %v891 = vmul.f32 %v804, %v878
        %v892 = vmul.f32 %v805, %v878
        %v893 = vmul.f32 %v806, %v878
        %v894 = vmul.f32 %v807, %v878
        %895 = vadd.xlane.f32.xlu0 %v879
        %v896 = vpop.xlane.xlu0 %895
        %897 = vadd.xlane.f32.xlu0 %v880
        %v898 = vpop.xlane.xlu0 %897
        %899 = vadd.xlane.f32.xlu0 %v881
        %v900 = vpop.xlane.xlu0 %899
        %901 = vadd.xlane.f32.xlu0 %v882
        %v902 = vpop.xlane.xlu0 %901
        %903 = vadd.xlane.f32.xlu0 %v883
        %v904 = vpop.xlane.xlu0 %903
        %905 = vadd.xlane.f32.xlu0 %v884
        %v906 = vpop.xlane.xlu0 %905
        %907 = vadd.xlane.f32.xlu0 %v885
        %v908 = vpop.xlane.xlu0 %907
        %909 = vadd.xlane.f32.xlu0 %v886
        %v910 = vpop.xlane.xlu0 %909
        %911 = vadd.xlane.f32.xlu0 %v887
        %v912 = vpop.xlane.xlu0 %911
        %913 = vadd.xlane.f32.xlu0 %v888
        %v914 = vpop.xlane.xlu0 %913
        %915 = vadd.xlane.f32.xlu0 %v889
        %v916 = vpop.xlane.xlu0 %915
        %917 = vadd.xlane.f32.xlu0 %v890
        %v918 = vpop.xlane.xlu0 %917
        %919 = vadd.xlane.f32.xlu0 %v891
        %v920 = vpop.xlane.xlu0 %919
        %921 = vadd.xlane.f32.xlu0 %v892
        %v922 = vpop.xlane.xlu0 %921
        %923 = vadd.xlane.f32.xlu0 %v893
        %v924 = vpop.xlane.xlu0 %923
        %925 = vadd.xlane.f32.xlu0 %v894
        %v926 = vpop.xlane.xlu0 %925
        %v927 = vadd.f32 %v896, %v860
        %v928 = vadd.f32 %v898, %v860
        %v929 = vadd.f32 %v900, %v860
        %v930 = vadd.f32 %v902, %v860
        %v931 = vadd.f32 %v904, %v860
        %v932 = vadd.f32 %v906, %v860
        %v933 = vadd.f32 %v908, %v860
        %v934 = vadd.f32 %v910, %v860
        %v935 = vadd.f32 %v912, %v860
        %v936 = vadd.f32 %v914, %v860
        %v937 = vadd.f32 %v916, %v860
        %v938 = vadd.f32 %v918, %v860
        %v939 = vadd.f32 %v920, %v860
        %v940 = vadd.f32 %v922, %v860
        %v941 = vadd.f32 %v924, %v860
        %v942 = vadd.f32 %v926, %v860
        %v943 = vmax.f32 %v862, %v927
        %v944 = vmax.f32 %v863, %v928
        %v945 = vmax.f32 %v864, %v929
        %v946 = vmax.f32 %v865, %v930
        %v947 = vmax.f32 %v866, %v931
        %v948 = vmax.f32 %v867, %v932
        %v949 = vmax.f32 %v868, %v933
        %v950 = vmax.f32 %v869, %v934
        %v951 = vmax.f32 %v870, %v935
        %v952 = vmax.f32 %v871, %v936
        %v953 = vmax.f32 %v872, %v937
        %v954 = vmax.f32 %v873, %v938
        %v955 = vmax.f32 %v874, %v939
        %v956 = vmax.f32 %v875, %v940
        %v957 = vmax.f32 %v876, %v941
        %v958 = vmax.f32 %v877, %v942
        %v959 = vsub.f32 %v862, %v943
        %v960 = vsub.f32 %v863, %v944
        %v961 = vsub.f32 %v864, %v945
        %v962 = vsub.f32 %v865, %v946
        %v963 = vsub.f32 %v866, %v947
        %v964 = vsub.f32 %v867, %v948
        %v965 = vsub.f32 %v868, %v949
        %v966 = vsub.f32 %v869, %v950
        %v967 = vsub.f32 %v870, %v951
        %v968 = vsub.f32 %v871, %v952
        %v969 = vsub.f32 %v872, %v953
        %v970 = vsub.f32 %v873, %v954
        %v971 = vsub.f32 %v874, %v955
        %v972 = vsub.f32 %v875, %v956
        %v973 = vsub.f32 %v876, %v957
        %v974 = vsub.f32 %v877, %v958
        %v975 = vmul.f32 %v959, 1.442695
        %v976 = vpow.pop %v975
        %v977 = vmul.f32 %v960, 1.442695
        %v978 = vpow.pop %v977
        %v979 = vmul.f32 %v961, 1.442695
        %v980 = vpow.pop %v979
        %v981 = vmul.f32 %v962, 1.442695
        %v982 = vpow.pop %v981
        %v983 = vmul.f32 %v963, 1.442695
        %v984 = vpow.pop %v983
        %v985 = vmul.f32 %v964, 1.442695
        %v986 = vpow.pop %v985
        %v987 = vmul.f32 %v965, 1.442695
        %v988 = vpow.pop %v987
        %v989 = vmul.f32 %v966, 1.442695
        %v990 = vpow.pop %v989
        %v991 = vmul.f32 %v967, 1.442695
        %v992 = vpow.pop %v991
        %v993 = vmul.f32 %v968, 1.442695
        %v994 = vpow.pop %v993
        %v995 = vmul.f32 %v969, 1.442695
        %v996 = vpow.pop %v995
        %v997 = vmul.f32 %v970, 1.442695
        %v998 = vpow.pop %v997
        %v999 = vmul.f32 %v971, 1.442695
        %v1000 = vpow.pop %v999
        %v1001 = vmul.f32 %v972, 1.442695
        %v1002 = vpow.pop %v1001
        %v1003 = vmul.f32 %v973, 1.442695
        %v1004 = vpow.pop %v1003
        %v1005 = vmul.f32 %v974, 1.442695
        %v1006 = vpow.pop %v1005
        %v1007 = vsub.f32 %v927, %v943
        %v1008 = vsub.f32 %v928, %v944
        %v1009 = vsub.f32 %v929, %v945
        %v1010 = vsub.f32 %v930, %v946
        %v1011 = vsub.f32 %v931, %v947
        %v1012 = vsub.f32 %v932, %v948
        %v1013 = vsub.f32 %v933, %v949
        %v1014 = vsub.f32 %v934, %v950
        %v1015 = vsub.f32 %v935, %v951
        %v1016 = vsub.f32 %v936, %v952
        %v1017 = vsub.f32 %v937, %v953
        %v1018 = vsub.f32 %v938, %v954
        %v1019 = vsub.f32 %v939, %v955
        %v1020 = vsub.f32 %v940, %v956
        %v1021 = vsub.f32 %v941, %v957
        %v1022 = vsub.f32 %v942, %v958
        %v1023 = vmul.f32 %v1007, 1.442695
        %v1024 = vpow.pop %v1023
        %v1025 = vmul.f32 %v1008, 1.442695
        %v1026 = vpow.pop %v1025
        %v1027 = vmul.f32 %v1009, 1.442695
        %v1028 = vpow.pop %v1027
        %v1029 = vmul.f32 %v1010, 1.442695
        %v1030 = vpow.pop %v1029
        %v1031 = vmul.f32 %v1011, 1.442695
        %v1032 = vpow.pop %v1031
        %v1033 = vmul.f32 %v1012, 1.442695
        %v1034 = vpow.pop %v1033
        %v1035 = vmul.f32 %v1013, 1.442695
        %v1036 = vpow.pop %v1035
        %v1037 = vmul.f32 %v1014, 1.442695
        %v1038 = vpow.pop %v1037
        %v1039 = vmul.f32 %v1015, 1.442695
        %v1040 = vpow.pop %v1039
        %v1041 = vmul.f32 %v1016, 1.442695
        %v1042 = vpow.pop %v1041
        %v1043 = vmul.f32 %v1017, 1.442695
        %v1044 = vpow.pop %v1043
        %v1045 = vmul.f32 %v1018, 1.442695
        %v1046 = vpow.pop %v1045
        %v1047 = vmul.f32 %v1019, 1.442695
        %v1048 = vpow.pop %v1047
        %v1049 = vmul.f32 %v1020, 1.442695
        %v1050 = vpow.pop %v1049
        %v1051 = vmul.f32 %v1021, 1.442695
        %v1052 = vpow.pop %v1051
        %v1053 = vmul.f32 %v1022, 1.442695
        %v1054 = vpow.pop %v1053
        %v1055 = vadd.f32 %v976, %v1024
        %v1056 = vadd.f32 %v978, %v1026
        %v1057 = vadd.f32 %v980, %v1028
        %v1058 = vadd.f32 %v982, %v1030
        %v1059 = vadd.f32 %v984, %v1032
        %v1060 = vadd.f32 %v986, %v1034
        %v1061 = vadd.f32 %v988, %v1036
        %v1062 = vadd.f32 %v990, %v1038
        %v1063 = vadd.f32 %v992, %v1040
        %v1064 = vadd.f32 %v994, %v1042
        %v1065 = vadd.f32 %v996, %v1044
        %v1066 = vadd.f32 %v998, %v1046
        %v1067 = vadd.f32 %v1000, %v1048
        %v1068 = vadd.f32 %v1002, %v1050
        %v1069 = vadd.f32 %v1004, %v1052
        %v1070 = vadd.f32 %v1006, %v1054
        %v1071 = vrcp.pop %v1055
        %v1072 = vrcp.pop %v1056
        %v1073 = vrcp.pop %v1057
        %v1074 = vrcp.pop %v1058
        %v1075 = vrcp.pop %v1059
        %v1076 = vrcp.pop %v1060
        %v1077 = vrcp.pop %v1061
        %v1078 = vrcp.pop %v1062
        %v1079 = vrcp.pop %v1063
        %v1080 = vrcp.pop %v1064
        %v1081 = vrcp.pop %v1065
        %v1082 = vrcp.pop %v1066
        %v1083 = vrcp.pop %v1067
        %v1084 = vrcp.pop %v1068
        %v1085 = vrcp.pop %v1069
        %v1086 = vrcp.pop %v1070
        %v1087 = vmul.f32 %v976, %v1071
        %v1088 = vmul.f32 %v978, %v1072
        %v1089 = vmul.f32 %v980, %v1073
        %v1090 = vmul.f32 %v982, %v1074
        %v1091 = vmul.f32 %v984, %v1075
        %v1092 = vmul.f32 %v986, %v1076
        %v1093 = vmul.f32 %v988, %v1077
        %v1094 = vmul.f32 %v990, %v1078
        %v1095 = vmul.f32 %v992, %v1079
        %v1096 = vmul.f32 %v994, %v1080
        %v1097 = vmul.f32 %v996, %v1081
        %v1098 = vmul.f32 %v998, %v1082
        %v1099 = vmul.f32 %v1000, %v1083
        %v1100 = vmul.f32 %v1002, %v1084
        %v1101 = vmul.f32 %v1004, %v1085
        %v1102 = vmul.f32 %v1006, %v1086
        %v1103 = vmul.f32 %v1024, %v1071
        %v1104 = vmul.f32 %v1026, %v1072
        %v1105 = vmul.f32 %v1028, %v1073
        %v1106 = vmul.f32 %v1030, %v1074
        %v1107 = vmul.f32 %v1032, %v1075
        %v1108 = vmul.f32 %v1034, %v1076
        %v1109 = vmul.f32 %v1036, %v1077
        %v1110 = vmul.f32 %v1038, %v1078
        %v1111 = vmul.f32 %v1040, %v1079
        %v1112 = vmul.f32 %v1042, %v1080
        %v1113 = vmul.f32 %v1044, %v1081
        %v1114 = vmul.f32 %v1046, %v1082
        %v1115 = vmul.f32 %v1048, %v1083
        %v1116 = vmul.f32 %v1050, %v1084
        %v1117 = vmul.f32 %v1052, %v1085
        %v1118 = vmul.f32 %v1054, %v1086
        %vm1119 = vcmp.eq.s32.totalorder %v790, 1
        %1121 = vset.pattern.permute.xlu0 0
        %1122 = vperm.xlu0 %1121, %v1087
        %v1123 = vpop.permute.xlu0 %1122
        %1126 = vset.pattern.permute.xlu0 0
        %1127 = vperm.xlu0 %1126, %v1088
        %v1128 = vpop.permute.xlu0 %1127
        %1131 = vset.pattern.permute.xlu0 0
        %1132 = vperm.xlu0 %1131, %v1089
        %v1133 = vpop.permute.xlu0 %1132
        %1136 = vset.pattern.permute.xlu0 0
        %1137 = vperm.xlu0 %1136, %v1090
        %v1138 = vpop.permute.xlu0 %1137
        %1141 = vset.pattern.permute.xlu0 0
        %1142 = vperm.xlu0 %1141, %v1091
        %v1143 = vpop.permute.xlu0 %1142
        %1146 = vset.pattern.permute.xlu0 0
        %1147 = vperm.xlu0 %1146, %v1092
        %v1148 = vpop.permute.xlu0 %1147
        %1151 = vset.pattern.permute.xlu0 0
        %1152 = vperm.xlu0 %1151, %v1093
        %v1153 = vpop.permute.xlu0 %1152
        %1156 = vset.pattern.permute.xlu0 0
        %1157 = vperm.xlu0 %1156, %v1094
        %v1158 = vpop.permute.xlu0 %1157
        %1161 = vset.pattern.permute.xlu0 0
        %1162 = vperm.xlu0 %1161, %v1095
        %v1163 = vpop.permute.xlu0 %1162
        %1166 = vset.pattern.permute.xlu0 0
        %1167 = vperm.xlu0 %1166, %v1096
        %v1168 = vpop.permute.xlu0 %1167
        %1171 = vset.pattern.permute.xlu0 0
        %1172 = vperm.xlu0 %1171, %v1097
        %v1173 = vpop.permute.xlu0 %1172
        %1176 = vset.pattern.permute.xlu0 0
        %1177 = vperm.xlu0 %1176, %v1098
        %v1178 = vpop.permute.xlu0 %1177
        %1181 = vset.pattern.permute.xlu0 0
        %1182 = vperm.xlu0 %1181, %v1099
        %v1183 = vpop.permute.xlu0 %1182
        %1186 = vset.pattern.permute.xlu0 0
        %1187 = vperm.xlu0 %1186, %v1100
        %v1188 = vpop.permute.xlu0 %1187
        %1191 = vset.pattern.permute.xlu0 0
        %1192 = vperm.xlu0 %1191, %v1101
        %v1193 = vpop.permute.xlu0 %1192
        %1196 = vset.pattern.permute.xlu0 0
        %1197 = vperm.xlu0 %1196, %v1102
        %v1198 = vpop.permute.xlu0 %1197
        %1201 = vset.pattern.permute.xlu0 0
        %1202 = vperm.xlu0 %1201, %v1103
        %v1203 = vpop.permute.xlu0 %1202
        %1206 = vset.pattern.permute.xlu0 0
        %1207 = vperm.xlu0 %1206, %v1104
        %v1208 = vpop.permute.xlu0 %1207
        %1211 = vset.pattern.permute.xlu0 0
        %1212 = vperm.xlu0 %1211, %v1105
        %v1213 = vpop.permute.xlu0 %1212
        %1216 = vset.pattern.permute.xlu0 0
        %1217 = vperm.xlu0 %1216, %v1106
        %v1218 = vpop.permute.xlu0 %1217
        %1221 = vset.pattern.permute.xlu0 0
        %1222 = vperm.xlu0 %1221, %v1107
        %v1223 = vpop.permute.xlu0 %1222
        %1226 = vset.pattern.permute.xlu0 0
        %1227 = vperm.xlu0 %1226, %v1108
        %v1228 = vpop.permute.xlu0 %1227
        %1231 = vset.pattern.permute.xlu0 0
        %1232 = vperm.xlu0 %1231, %v1109
        %v1233 = vpop.permute.xlu0 %1232
        %1236 = vset.pattern.permute.xlu0 0
        %1237 = vperm.xlu0 %1236, %v1110
        %v1238 = vpop.permute.xlu0 %1237
        %1241 = vset.pattern.permute.xlu0 0
        %1242 = vperm.xlu0 %1241, %v1111
        %v1243 = vpop.permute.xlu0 %1242
        %1246 = vset.pattern.permute.xlu0 0
        %1247 = vperm.xlu0 %1246, %v1112
        %v1248 = vpop.permute.xlu0 %1247
        %1251 = vset.pattern.permute.xlu0 0
        %1252 = vperm.xlu0 %1251, %v1113
        %v1253 = vpop.permute.xlu0 %1252
        %1256 = vset.pattern.permute.xlu0 0
        %1257 = vperm.xlu0 %1256, %v1114
        %v1258 = vpop.permute.xlu0 %1257
        %1261 = vset.pattern.permute.xlu0 0
        %1262 = vperm.xlu0 %1261, %v1115
        %v1263 = vpop.permute.xlu0 %1262
        %1266 = vset.pattern.permute.xlu0 0
        %1267 = vperm.xlu0 %1266, %v1116
        %v1268 = vpop.permute.xlu0 %1267
        %1271 = vset.pattern.permute.xlu0 0
        %1272 = vperm.xlu0 %1271, %v1117
        %v1273 = vpop.permute.xlu0 %1272
        %1276 = vset.pattern.permute.xlu0 0
        %1277 = vperm.xlu0 %1276, %v1118
        %v1278 = vpop.permute.xlu0 %1277
        %v1280 = vsel %vm1119, %v1123, %v1203
        %v1281 = vsel %vm1119, %v1128, %v1208
        %v1282 = vsel %vm1119, %v1133, %v1213
        %v1283 = vsel %vm1119, %v1138, %v1218
        %v1284 = vsel %vm1119, %v1143, %v1223
        %v1285 = vsel %vm1119, %v1148, %v1228
        %v1286 = vsel %vm1119, %v1153, %v1233
        %v1287 = vsel %vm1119, %v1158, %v1238
        %v1288 = vsel %vm1119, %v1163, %v1243
        %v1289 = vsel %vm1119, %v1168, %v1248
        %v1290 = vsel %vm1119, %v1173, %v1253
        %v1291 = vsel %vm1119, %v1178, %v1258
        %v1292 = vsel %vm1119, %v1183, %v1263
        %v1293 = vsel %vm1119, %v1188, %v1268
        %v1294 = vsel %vm1119, %v1193, %v1273
        %v1295 = vsel %vm1119, %v1198, %v1278
        %v1296 = vmul.f32 %v725, %v1280
        %v1297 = vmul.f32 %v728, %v1281
        %v1298 = vmul.f32 %v733, %v1282
        %v1299 = vmul.f32 %v736, %v1283
        %v1300 = vmul.f32 %v741, %v1284
        %v1301 = vmul.f32 %v744, %v1285
        %v1302 = vmul.f32 %v749, %v1286
        %v1303 = vmul.f32 %v752, %v1287
        %v1304 = vmul.f32 %v757, %v1288
        %v1305 = vmul.f32 %v760, %v1289
        %v1306 = vmul.f32 %v765, %v1290
        %v1307 = vmul.f32 %v768, %v1291
        %v1308 = vmul.f32 %v773, %v1292
        %v1309 = vmul.f32 %v776, %v1293
        %v1310 = vmul.f32 %v781, %v1294
        %v1311 = vmul.f32 %v784, %v1295
        %v1312 = vpack.c.bf16 %v1297, %v1296
        %v1313 = vpack.c.bf16 %v1299, %v1298
        %v1314 = vpack.c.bf16 %v1301, %v1300
        %v1315 = vpack.c.bf16 %v1303, %v1302
        %v1316 = vpack.c.bf16 %v1305, %v1304
        %v1317 = vpack.c.bf16 %v1307, %v1306
        %v1318 = vpack.c.bf16 %v1309, %v1308
        %v1319 = vpack.c.bf16 %v1311, %v1310
        %v1320 = vld [vmem:[#allocation7 + $0x80] sm:$0xf]
        %v1321 = vld [vmem:[#allocation7 + $0x84] sm:$0xf]
        %v1322 = vld [vmem:[#allocation7 + $0x88] sm:$0xf]
        %v1323 = vld [vmem:[#allocation7 + $0x8c] sm:$0xf]
        %v1324 = vld [vmem:[#allocation7 + $0x90] sm:$0xf]
        %v1325 = vld [vmem:[#allocation7 + $0x94] sm:$0xf]
        %v1326 = vld [vmem:[#allocation7 + $0x98] sm:$0xf]
        %v1327 = vld [vmem:[#allocation7 + $0x9c] sm:$0xf]
        %v1328 = vld [vmem:[#allocation7 + $0xa0] sm:$0xf]
        %v1329 = vld [vmem:[#allocation7 + $0xa4] sm:$0xf]
        %v1330 = vld [vmem:[#allocation7 + $0xa8] sm:$0xf]
        %v1331 = vld [vmem:[#allocation7 + $0xac] sm:$0xf]
        %v1332 = vld [vmem:[#allocation7 + $0xb0] sm:$0xf]
        %v1333 = vld [vmem:[#allocation7 + $0xb4] sm:$0xf]
        %v1334 = vld [vmem:[#allocation7 + $0xb8] sm:$0xf]
        %v1335 = vld [vmem:[#allocation7 + $0xbc] sm:$0xf]
        %v1352 = vunpack.c.l.b16 %v1320
        %v1353 = vunpack.c.l.b16 %v1321
        %v1354 = vunpack.c.l.b16 %v1322
        %v1355 = vunpack.c.l.b16 %v1323
        %v1356 = vunpack.c.l.b16 %v1324
        %v1357 = vunpack.c.l.b16 %v1325
        %v1358 = vunpack.c.l.b16 %v1326
        %v1359 = vunpack.c.l.b16 %v1327
        %v1360 = vunpack.c.l.b16 %v1328
        %v1361 = vunpack.c.l.b16 %v1329
        %v1362 = vunpack.c.l.b16 %v1330
        %v1363 = vunpack.c.l.b16 %v1331
        %v1364 = vunpack.c.l.b16 %v1332
        %v1365 = vunpack.c.l.b16 %v1333
        %v1366 = vunpack.c.l.b16 %v1334
        %v1367 = vunpack.c.l.b16 %v1335
        %v1368 = vpack.c.b16 %v1353, %v1352
        %v1369 = vpack.c.b16 %v1355, %v1354
        %v1370 = vpack.c.b16 %v1357, %v1356
        %v1371 = vpack.c.b16 %v1359, %v1358
        %v1372 = vpack.c.b16 %v1361, %v1360
        %v1373 = vpack.c.b16 %v1363, %v1362
        %v1374 = vpack.c.b16 %v1365, %v1364
        %v1375 = vpack.c.b16 %v1367, %v1366
        %1384 = vmatprep.subr.bf16.mxu0 0
        %1385 = vmatpush1.bf16.msra.mxu0 %v1375
        %1386 = vmatprep.subr.bf16.mxu0 0
        %1387 = vmatpush1.bf16.msra.mxu0 %v1374
        %1388 = vmatprep.subr.bf16.mxu0 0
        %1389 = vmatpush1.bf16.msra.mxu0 %v1373
        %1390 = vmatprep.subr.bf16.mxu0 0
        %1391 = vmatpush1.bf16.msra.mxu0 %v1372
        %1392 = vmatprep.subr.bf16.mxu0 0
        %1393 = vmatpush1.bf16.msra.mxu0 %v1371
        %1394 = vmatprep.subr.bf16.mxu0 0
        %1395 = vmatpush1.bf16.msra.mxu0 %v1370
        %1396 = vmatprep.subr.bf16.mxu0 0
        %1397 = vmatpush1.bf16.msra.mxu0 %v1369
        %1398 = vmatprep.subr.bf16.mxu0 0
        %1399 = vmatpush1.bf16.msra.mxu0 %v1368
        %1400 = vmatprep.subr.bf16.mxu0 0
        %1401 = vmatpush2.bf16.msra.mxu0 0
        %1402 = vmatprep.subr.bf16.mxu0 0
        %1403 = vmatpush2.bf16.msra.mxu0 0
        %1404 = vmatprep.subr.bf16.mxu0 0
        %1405 = vmatpush2.bf16.msra.mxu0 0
        %1406 = vmatprep.subr.bf16.mxu0 0
        %1407 = vmatpush2.bf16.msra.mxu0 0
        %1408 = vmatprep.subr.bf16.mxu0 0
        %1409 = vmatpush2.bf16.msra.mxu0 0
        %1410 = vmatprep.subr.bf16.mxu0 0
        %1411 = vmatpush2.bf16.msra.mxu0 0
        %1412 = vmatprep.subr.bf16.mxu0 0
        %1413 = vmatpush2.bf16.msra.mxu0 0
        %1414 = vmatprep.subr.bf16.mxu0 0
        %1415 = vmatpush2.bf16.msra.mxu0 0
        %1416 = vmatprep.mubr.bf16.mxu0 0
        %1417 = vmatmul.mubr.bf16.gmra.mxu0 %v1312
        %v1418 = vpop.f32.mrf.mxu0
        %v1419 = vadd.f32 %v287, %v1418
        %v1420 = vpop.f32.mrf.mxu0
        %v1421 = vpop.f32.mrf.mxu0
        %v1422 = vadd.f32 %v287, %v1421
        %v1423 = vpop.f32.mrf.mxu0
        %1424 = vmatprep.mubr.bf16.mxu0 0
        %1425 = vmatmul.mubr.bf16.gmra.mxu0 %v1313
        %v1426 = vpop.f32.mrf.mxu0
        %v1427 = vadd.f32 %v287, %v1426
        %v1428 = vpop.f32.mrf.mxu0
        %v1429 = vpop.f32.mrf.mxu0
        %v1430 = vadd.f32 %v287, %v1429
        %v1431 = vpop.f32.mrf.mxu0
        %1432 = vmatprep.mubr.bf16.mxu0 0
        %1433 = vmatmul.mubr.bf16.gmra.mxu0 %v1314
        %v1434 = vpop.f32.mrf.mxu0
        %v1435 = vadd.f32 %v287, %v1434
        %v1436 = vpop.f32.mrf.mxu0
        %v1437 = vpop.f32.mrf.mxu0
        %v1438 = vadd.f32 %v287, %v1437
        %v1439 = vpop.f32.mrf.mxu0
        %1440 = vmatprep.mubr.bf16.mxu0 0
        %1441 = vmatmul.mubr.bf16.gmra.mxu0 %v1315
        %v1442 = vpop.f32.mrf.mxu0
        %v1443 = vadd.f32 %v287, %v1442
        %v1444 = vpop.f32.mrf.mxu0
        %v1445 = vpop.f32.mrf.mxu0
        %v1446 = vadd.f32 %v287, %v1445
        %v1447 = vpop.f32.mrf.mxu0
        %1448 = vmatprep.mubr.bf16.mxu0 0
        %1449 = vmatmul.mubr.bf16.gmra.mxu0 %v1316
        %v1450 = vpop.f32.mrf.mxu0
        %v1451 = vadd.f32 %v287, %v1450
        %v1452 = vpop.f32.mrf.mxu0
        %v1453 = vpop.f32.mrf.mxu0
        %v1454 = vadd.f32 %v287, %v1453
        %v1455 = vpop.f32.mrf.mxu0
        %1456 = vmatprep.mubr.bf16.mxu0 0
        %1457 = vmatmul.mubr.bf16.gmra.mxu0 %v1317
        %v1458 = vpop.f32.mrf.mxu0
        %v1459 = vadd.f32 %v287, %v1458
        %v1460 = vpop.f32.mrf.mxu0
        %v1461 = vpop.f32.mrf.mxu0
        %v1462 = vadd.f32 %v287, %v1461
        %v1463 = vpop.f32.mrf.mxu0
        %1464 = vmatprep.mubr.bf16.mxu0 0
        %1465 = vmatmul.mubr.bf16.gmra.mxu0 %v1318
        %v1466 = vpop.f32.mrf.mxu0
        %v1467 = vadd.f32 %v287, %v1466
        %v1468 = vpop.f32.mrf.mxu0
        %v1469 = vpop.f32.mrf.mxu0
        %v1470 = vadd.f32 %v287, %v1469
        %v1471 = vpop.f32.mrf.mxu0
        %1472 = vmatprep.mubr.bf16.mxu0 0
        %1473 = vmatmul.mubr.bf16.gmra.mxu0 %v1319
        %v1474 = vpop.f32.mrf.mxu0
        %v1475 = vadd.f32 %v287, %v1474
        %v1476 = vpop.f32.mrf.mxu0
        %v1477 = vpop.f32.mrf.mxu0
        %v1478 = vadd.f32 %v287, %v1477
        %v1479 = vpop.f32.mrf.mxu0
        %1480 = vdwg.mxu0
        %v1481 = vmax.f32 %v1419, 0.0
        %v1482 = vmax.f32 %v1422, 0.0
        %v1483 = vmax.f32 %v1427, 0.0
        %v1484 = vmax.f32 %v1430, 0.0
        %v1485 = vmax.f32 %v1435, 0.0
        %v1486 = vmax.f32 %v1438, 0.0
        %v1487 = vmax.f32 %v1443, 0.0
        %v1488 = vmax.f32 %v1446, 0.0
        %v1489 = vmax.f32 %v1451, 0.0
        %v1490 = vmax.f32 %v1454, 0.0
        %v1491 = vmax.f32 %v1459, 0.0
        %v1492 = vmax.f32 %v1462, 0.0
        %v1493 = vmax.f32 %v1467, 0.0
        %v1494 = vmax.f32 %v1470, 0.0
        %v1495 = vmax.f32 %v1475, 0.0
        %v1496 = vmax.f32 %v1478, 0.0
        %v1497 = vpack.c.bf16 %v1482, %v1481
        %v1498 = vpack.c.bf16 %v1484, %v1483
        %v1499 = vpack.c.bf16 %v1486, %v1485
        %v1500 = vpack.c.bf16 %v1488, %v1487
        %v1501 = vpack.c.bf16 %v1490, %v1489
        %v1502 = vpack.c.bf16 %v1492, %v1491
        %v1503 = vpack.c.bf16 %v1494, %v1493
        %v1504 = vpack.c.bf16 %v1496, %v1495
        %v1505 = vld [vmem:[#allocation7 + $0xc0] sm:$0xf]
        %v1506 = vld [vmem:[#allocation7 + $0xc4] sm:$0xf]
        %v1507 = vld [vmem:[#allocation7 + $0xc8] sm:$0xf]
        %v1508 = vld [vmem:[#allocation7 + $0xcc] sm:$0xf]
        %v1509 = vld [vmem:[#allocation7 + $0xd0] sm:$0xf]
        %v1510 = vld [vmem:[#allocation7 + $0xd4] sm:$0xf]
        %v1511 = vld [vmem:[#allocation7 + $0xd8] sm:$0xf]
        %v1512 = vld [vmem:[#allocation7 + $0xdc] sm:$0xf]
        %v1513 = vld [vmem:[#allocation7 + $0xe0] sm:$0xf]
        %v1514 = vld [vmem:[#allocation7 + $0xe4] sm:$0xf]
        %v1515 = vld [vmem:[#allocation7 + $0xe8] sm:$0xf]
        %v1516 = vld [vmem:[#allocation7 + $0xec] sm:$0xf]
        %v1517 = vld [vmem:[#allocation7 + $0xf0] sm:$0xf]
        %v1518 = vld [vmem:[#allocation7 + $0xf4] sm:$0xf]
        %v1519 = vld [vmem:[#allocation7 + $0xf8] sm:$0xf]
        %v1520 = vld [vmem:[#allocation7 + $0xfc] sm:$0xf]
        %v1537 = vunpack.c.l.b16 %v1505
        %v1538 = vunpack.c.l.b16 %v1506
        %v1539 = vunpack.c.l.b16 %v1507
        %v1540 = vunpack.c.l.b16 %v1508
        %v1541 = vunpack.c.l.b16 %v1509
        %v1542 = vunpack.c.l.b16 %v1510
        %v1543 = vunpack.c.l.b16 %v1511
        %v1544 = vunpack.c.l.b16 %v1512
        %v1545 = vunpack.c.l.b16 %v1513
        %v1546 = vunpack.c.l.b16 %v1514
        %v1547 = vunpack.c.l.b16 %v1515
        %v1548 = vunpack.c.l.b16 %v1516
        %v1549 = vunpack.c.l.b16 %v1517
        %v1550 = vunpack.c.l.b16 %v1518
        %v1551 = vunpack.c.l.b16 %v1519
        %v1552 = vunpack.c.l.b16 %v1520
        %v1553 = vpack.c.b16 %v1538, %v1537
        %v1554 = vpack.c.b16 %v1540, %v1539
        %v1555 = vpack.c.b16 %v1542, %v1541
        %v1556 = vpack.c.b16 %v1544, %v1543
        %v1557 = vpack.c.b16 %v1546, %v1545
        %v1558 = vpack.c.b16 %v1548, %v1547
        %v1559 = vpack.c.b16 %v1550, %v1549
        %v1560 = vpack.c.b16 %v1552, %v1551
        %1569 = vmatprep.subr.bf16.mxu0 0
        %1570 = vmatpush1.bf16.msra.mxu0 %v1560
        %1571 = vmatprep.subr.bf16.mxu0 0
        %1572 = vmatpush1.bf16.msra.mxu0 %v1559
        %1573 = vmatprep.subr.bf16.mxu0 0
        %1574 = vmatpush1.bf16.msra.mxu0 %v1558
        %1575 = vmatprep.subr.bf16.mxu0 0
        %1576 = vmatpush1.bf16.msra.mxu0 %v1557
        %1577 = vmatprep.subr.bf16.mxu0 0
        %1578 = vmatpush1.bf16.msra.mxu0 %v1556
        %1579 = vmatprep.subr.bf16.mxu0 0
        %1580 = vmatpush1.bf16.msra.mxu0 %v1555
        %1581 = vmatprep.subr.bf16.mxu0 0
        %1582 = vmatpush1.bf16.msra.mxu0 %v1554
        %1583 = vmatprep.subr.bf16.mxu0 0
        %1584 = vmatpush1.bf16.msra.mxu0 %v1553
        %1585 = vmatprep.subr.bf16.mxu0 0
        %1586 = vmatpush2.bf16.msra.mxu0 0
        %1587 = vmatprep.subr.bf16.mxu0 0
        %1588 = vmatpush2.bf16.msra.mxu0 0
        %1589 = vmatprep.subr.bf16.mxu0 0
        %1590 = vmatpush2.bf16.msra.mxu0 0
        %1591 = vmatprep.subr.bf16.mxu0 0
        %1592 = vmatpush2.bf16.msra.mxu0 0
        %1593 = vmatprep.subr.bf16.mxu0 0
        %1594 = vmatpush2.bf16.msra.mxu0 0
        %1595 = vmatprep.subr.bf16.mxu0 0
        %1596 = vmatpush2.bf16.msra.mxu0 0
        %1597 = vmatprep.subr.bf16.mxu0 0
        %1598 = vmatpush2.bf16.msra.mxu0 0
        %1599 = vmatprep.subr.bf16.mxu0 0
        %1600 = vmatpush2.bf16.msra.mxu0 0
        %1601 = vmatprep.mubr.bf16.mxu0 0
        %1602 = vmatmul.mubr.bf16.gmra.mxu0 %v1497
        %v1603 = vpop.f32.mrf.mxu0
        %v1604 = vadd.f32 %v288, %v1603
        %v1605 = vpop.f32.mrf.mxu0
        %v1606 = vpop.f32.mrf.mxu0
        %v1607 = vadd.f32 %v288, %v1606
        %v1608 = vpop.f32.mrf.mxu0
        %1609 = vmatprep.mubr.bf16.mxu0 0
        %1610 = vmatmul.mubr.bf16.gmra.mxu0 %v1498
        %v1611 = vpop.f32.mrf.mxu0
        %v1612 = vadd.f32 %v288, %v1611
        %v1613 = vpop.f32.mrf.mxu0
        %v1614 = vpop.f32.mrf.mxu0
        %v1615 = vadd.f32 %v288, %v1614
        %v1616 = vpop.f32.mrf.mxu0
        %1617 = vmatprep.mubr.bf16.mxu0 0
        %1618 = vmatmul.mubr.bf16.gmra.mxu0 %v1499
        %v1619 = vpop.f32.mrf.mxu0
        %v1620 = vadd.f32 %v288, %v1619
        %v1621 = vpop.f32.mrf.mxu0
        %v1622 = vpop.f32.mrf.mxu0
        %v1623 = vadd.f32 %v288, %v1622
        %v1624 = vpop.f32.mrf.mxu0
        %1625 = vmatprep.mubr.bf16.mxu0 0
        %1626 = vmatmul.mubr.bf16.gmra.mxu0 %v1500
        %v1627 = vpop.f32.mrf.mxu0
        %v1628 = vadd.f32 %v288, %v1627
        %v1629 = vpop.f32.mrf.mxu0
        %v1630 = vpop.f32.mrf.mxu0
        %v1631 = vadd.f32 %v288, %v1630
        %v1632 = vpop.f32.mrf.mxu0
        %1633 = vmatprep.mubr.bf16.mxu0 0
        %1634 = vmatmul.mubr.bf16.gmra.mxu0 %v1501
        %v1635 = vpop.f32.mrf.mxu0
        %v1636 = vadd.f32 %v288, %v1635
        %v1637 = vpop.f32.mrf.mxu0
        %v1638 = vpop.f32.mrf.mxu0
        %v1639 = vadd.f32 %v288, %v1638
        %v1640 = vpop.f32.mrf.mxu0
        %1641 = vmatprep.mubr.bf16.mxu0 0
        %1642 = vmatmul.mubr.bf16.gmra.mxu0 %v1502
        %v1643 = vpop.f32.mrf.mxu0
        %v1644 = vadd.f32 %v288, %v1643
        %v1645 = vpop.f32.mrf.mxu0
        %v1646 = vpop.f32.mrf.mxu0
        %v1647 = vadd.f32 %v288, %v1646
        %v1648 = vpop.f32.mrf.mxu0
        %1649 = vmatprep.mubr.bf16.mxu0 0
        %1650 = vmatmul.mubr.bf16.gmra.mxu0 %v1503
        %v1651 = vpop.f32.mrf.mxu0
        %v1652 = vadd.f32 %v288, %v1651
        %v1653 = vpop.f32.mrf.mxu0
        %v1654 = vpop.f32.mrf.mxu0
        %v1655 = vadd.f32 %v288, %v1654
        %v1656 = vpop.f32.mrf.mxu0
        %1657 = vmatprep.mubr.bf16.mxu0 0
        %1658 = vmatmul.mubr.bf16.gmra.mxu0 %v1504
        %v1659 = vpop.f32.mrf.mxu0
        %v1660 = vadd.f32 %v288, %v1659
        %v1661 = vpop.f32.mrf.mxu0
        %v1662 = vpop.f32.mrf.mxu0
        %v1663 = vadd.f32 %v288, %v1662
        %v1664 = vpop.f32.mrf.mxu0
        %1665 = vdwg.mxu0
        %v1666 = vadd.f32 %v261, %v1604
        %v1667 = vadd.f32 %v262, %v1607
        %v1668 = vadd.f32 %v263, %v1612
        %v1669 = vadd.f32 %v264, %v1615
        %v1670 = vadd.f32 %v265, %v1620
        %v1671 = vadd.f32 %v266, %v1623
        %v1672 = vadd.f32 %v267, %v1628
        %v1673 = vadd.f32 %v268, %v1631
        %v1674 = vadd.f32 %v269, %v1636
        %v1675 = vadd.f32 %v270, %v1639
        %v1676 = vadd.f32 %v271, %v1644
        %v1677 = vadd.f32 %v272, %v1647
        %v1678 = vadd.f32 %v273, %v1652
        %v1679 = vadd.f32 %v274, %v1655
        %v1680 = vadd.f32 %v275, %v1660
        %v1681 = vadd.f32 %v276, %v1663
        %v1682 = vpack.c.bf16 %v1667, %v1666
        %v1683 = vpack.c.bf16 %v1669, %v1668
        %v1684 = vpack.c.bf16 %v1671, %v1670
        %v1685 = vpack.c.bf16 %v1673, %v1672
        %v1686 = vpack.c.bf16 %v1675, %v1674
        %v1687 = vpack.c.bf16 %v1677, %v1676
        %v1688 = vpack.c.bf16 %v1679, %v1678
        %v1689 = vpack.c.bf16 %v1681, %v1680
        %v1690 = vld [vmem:[#allocation7 + $0x100] sm:$0xf]
        %v1691 = vld [vmem:[#allocation7 + $0x104] sm:$0xf]
        %v1692 = vld [vmem:[#allocation7 + $0x108] sm:$0xf]
        %v1693 = vld [vmem:[#allocation7 + $0x10c] sm:$0xf]
        %v1694 = vld [vmem:[#allocation7 + $0x110] sm:$0xf]
        %v1695 = vld [vmem:[#allocation7 + $0x114] sm:$0xf]
        %v1696 = vld [vmem:[#allocation7 + $0x118] sm:$0xf]
        %v1697 = vld [vmem:[#allocation7 + $0x11c] sm:$0xf]
        %v1698 = vld [vmem:[#allocation7 + $0x120] sm:$0xf]
        %v1699 = vld [vmem:[#allocation7 + $0x124] sm:$0xf]
        %v1700 = vld [vmem:[#allocation7 + $0x128] sm:$0xf]
        %v1701 = vld [vmem:[#allocation7 + $0x12c] sm:$0xf]
        %v1702 = vld [vmem:[#allocation7 + $0x130] sm:$0xf]
        %v1703 = vld [vmem:[#allocation7 + $0x134] sm:$0xf]
        %v1704 = vld [vmem:[#allocation7 + $0x138] sm:$0xf]
        %v1705 = vld [vmem:[#allocation7 + $0x13c] sm:$0xf]
        %v1722 = vunpack.c.l.b16 %v1690
        %v1723 = vunpack.c.l.b16 %v1691
        %v1724 = vunpack.c.l.b16 %v1692
        %v1725 = vunpack.c.l.b16 %v1693
        %v1726 = vunpack.c.l.b16 %v1694
        %v1727 = vunpack.c.l.b16 %v1695
        %v1728 = vunpack.c.l.b16 %v1696
        %v1729 = vunpack.c.l.b16 %v1697
        %v1730 = vunpack.c.l.b16 %v1698
        %v1731 = vunpack.c.l.b16 %v1699
        %v1732 = vunpack.c.l.b16 %v1700
        %v1733 = vunpack.c.l.b16 %v1701
        %v1734 = vunpack.c.l.b16 %v1702
        %v1735 = vunpack.c.l.b16 %v1703
        %v1736 = vunpack.c.l.b16 %v1704
        %v1737 = vunpack.c.l.b16 %v1705
        %v1738 = vpack.c.b16 %v1723, %v1722
        %v1739 = vpack.c.b16 %v1725, %v1724
        %v1740 = vpack.c.b16 %v1727, %v1726
        %v1741 = vpack.c.b16 %v1729, %v1728
        %v1742 = vpack.c.b16 %v1731, %v1730
        %v1743 = vpack.c.b16 %v1733, %v1732
        %v1744 = vpack.c.b16 %v1735, %v1734
        %v1745 = vpack.c.b16 %v1737, %v1736
        %1754 = vmatprep.subr.bf16.mxu0 0
        %1755 = vmatpush1.bf16.msra.mxu0 %v1745
        %1756 = vmatprep.subr.bf16.mxu0 0
        %1757 = vmatpush1.bf16.msra.mxu0 %v1744
        %1758 = vmatprep.subr.bf16.mxu0 0
        %1759 = vmatpush1.bf16.msra.mxu0 %v1743
        %1760 = vmatprep.subr.bf16.mxu0 0
        %1761 = vmatpush1.bf16.msra.mxu0 %v1742
        %1762 = vmatprep.subr.bf16.mxu0 0
        %1763 = vmatpush1.bf16.msra.mxu0 %v1741
        %1764 = vmatprep.subr.bf16.mxu0 0
        %1765 = vmatpush1.bf16.msra.mxu0 %v1740
        %1766 = vmatprep.subr.bf16.mxu0 0
        %1767 = vmatpush1.bf16.msra.mxu0 %v1739
        %1768 = vmatprep.subr.bf16.mxu0 0
        %1769 = vmatpush1.bf16.msra.mxu0 %v1738
        %1770 = vmatprep.subr.bf16.mxu0 0
        %1771 = vmatpush2.bf16.msra.mxu0 0
        %1772 = vmatprep.subr.bf16.mxu0 0
        %1773 = vmatpush2.bf16.msra.mxu0 0
        %1774 = vmatprep.subr.bf16.mxu0 0
        %1775 = vmatpush2.bf16.msra.mxu0 0
        %1776 = vmatprep.subr.bf16.mxu0 0
        %1777 = vmatpush2.bf16.msra.mxu0 0
        %1778 = vmatprep.subr.bf16.mxu0 0
        %1779 = vmatpush2.bf16.msra.mxu0 0
        %1780 = vmatprep.subr.bf16.mxu0 0
        %1781 = vmatpush2.bf16.msra.mxu0 0
        %1782 = vmatprep.subr.bf16.mxu0 0
        %1783 = vmatpush2.bf16.msra.mxu0 0
        %1784 = vmatprep.subr.bf16.mxu0 0
        %1785 = vmatpush2.bf16.msra.mxu0 0
        %1786 = vmatprep.mubr.bf16.mxu0 0
        %1787 = vmatmul.mubr.bf16.gmra.mxu0 %v1682
        %v1788 = vpop.f32.mrf.mxu0
        %v1789 = vadd.f32 %v289, %v1788
        %v1790 = vpop.f32.mrf.mxu0
        %v1791 = vpop.f32.mrf.mxu0
        %v1792 = vadd.f32 %v289, %v1791
        %v1793 = vpop.f32.mrf.mxu0
        %1794 = vmatprep.mubr.bf16.mxu0 0
        %1795 = vmatmul.mubr.bf16.gmra.mxu0 %v1683
        %v1796 = vpop.f32.mrf.mxu0
        %v1797 = vadd.f32 %v289, %v1796
        %v1798 = vpop.f32.mrf.mxu0
        %v1799 = vpop.f32.mrf.mxu0
        %v1800 = vadd.f32 %v289, %v1799
        %v1801 = vpop.f32.mrf.mxu0
        %1802 = vmatprep.mubr.bf16.mxu0 0
        %1803 = vmatmul.mubr.bf16.gmra.mxu0 %v1684
        %v1804 = vpop.f32.mrf.mxu0
        %v1805 = vadd.f32 %v289, %v1804
        %v1806 = vpop.f32.mrf.mxu0
        %v1807 = vpop.f32.mrf.mxu0
        %v1808 = vadd.f32 %v289, %v1807
        %v1809 = vpop.f32.mrf.mxu0
        %1810 = vmatprep.mubr.bf16.mxu0 0
        %1811 = vmatmul.mubr.bf16.gmra.mxu0 %v1685
        %v1812 = vpop.f32.mrf.mxu0
        %v1813 = vadd.f32 %v289, %v1812
        %v1814 = vpop.f32.mrf.mxu0
        %v1815 = vpop.f32.mrf.mxu0
        %v1816 = vadd.f32 %v289, %v1815
        %v1817 = vpop.f32.mrf.mxu0
        %1818 = vmatprep.mubr.bf16.mxu0 0
        %1819 = vmatmul.mubr.bf16.gmra.mxu0 %v1686
        %v1820 = vpop.f32.mrf.mxu0
        %v1821 = vadd.f32 %v289, %v1820
        %v1822 = vpop.f32.mrf.mxu0
        %v1823 = vpop.f32.mrf.mxu0
        %v1824 = vadd.f32 %v289, %v1823
        %v1825 = vpop.f32.mrf.mxu0
        %1826 = vmatprep.mubr.bf16.mxu0 0
        %1827 = vmatmul.mubr.bf16.gmra.mxu0 %v1687
        %v1828 = vpop.f32.mrf.mxu0
        %v1829 = vadd.f32 %v289, %v1828
        %v1830 = vpop.f32.mrf.mxu0
        %v1831 = vpop.f32.mrf.mxu0
        %v1832 = vadd.f32 %v289, %v1831
        %v1833 = vpop.f32.mrf.mxu0
        %1834 = vmatprep.mubr.bf16.mxu0 0
        %1835 = vmatmul.mubr.bf16.gmra.mxu0 %v1688
        %v1836 = vpop.f32.mrf.mxu0
        %v1837 = vadd.f32 %v289, %v1836
        %v1838 = vpop.f32.mrf.mxu0
        %v1839 = vpop.f32.mrf.mxu0
        %v1840 = vadd.f32 %v289, %v1839
        %v1841 = vpop.f32.mrf.mxu0
        %1842 = vmatprep.mubr.bf16.mxu0 0
        %1843 = vmatmul.mubr.bf16.gmra.mxu0 %v1689
        %v1844 = vpop.f32.mrf.mxu0
        %v1845 = vadd.f32 %v289, %v1844
        %v1846 = vpop.f32.mrf.mxu0
        %v1847 = vpop.f32.mrf.mxu0
        %v1848 = vadd.f32 %v289, %v1847
        %v1849 = vpop.f32.mrf.mxu0
        %1850 = vdwg.mxu0
        %v1851 = vmax.f32 %v1789, 0.0
        %v1852 = vmax.f32 %v1792, 0.0
        %v1853 = vmax.f32 %v1797, 0.0
        %v1854 = vmax.f32 %v1800, 0.0
        %v1855 = vmax.f32 %v1805, 0.0
        %v1856 = vmax.f32 %v1808, 0.0
        %v1857 = vmax.f32 %v1813, 0.0
        %v1858 = vmax.f32 %v1816, 0.0
        %v1859 = vmax.f32 %v1821, 0.0
        %v1860 = vmax.f32 %v1824, 0.0
        %v1861 = vmax.f32 %v1829, 0.0
        %v1862 = vmax.f32 %v1832, 0.0
        %v1863 = vmax.f32 %v1837, 0.0
        %v1864 = vmax.f32 %v1840, 0.0
        %v1865 = vmax.f32 %v1845, 0.0
        %v1866 = vmax.f32 %v1848, 0.0
        %v1867 = vpack.c.bf16 %v1852, %v1851
        %v1868 = vpack.c.bf16 %v1854, %v1853
        %v1869 = vpack.c.bf16 %v1856, %v1855
        %v1870 = vpack.c.bf16 %v1858, %v1857
        %v1871 = vpack.c.bf16 %v1860, %v1859
        %v1872 = vpack.c.bf16 %v1862, %v1861
        %v1873 = vpack.c.bf16 %v1864, %v1863
        %v1874 = vpack.c.bf16 %v1866, %v1865
        %v1875 = vld [vmem:[#allocation7 + $0x140] sm:$0xf]
        %v1876 = vld [vmem:[#allocation7 + $0x144] sm:$0xf]
        %v1877 = vld [vmem:[#allocation7 + $0x148] sm:$0xf]
        %v1878 = vld [vmem:[#allocation7 + $0x14c] sm:$0xf]
        %v1879 = vld [vmem:[#allocation7 + $0x150] sm:$0xf]
        %v1880 = vld [vmem:[#allocation7 + $0x154] sm:$0xf]
        %v1881 = vld [vmem:[#allocation7 + $0x158] sm:$0xf]
        %v1882 = vld [vmem:[#allocation7 + $0x15c] sm:$0xf]
        %v1883 = vld [vmem:[#allocation7 + $0x160] sm:$0xf]
        %v1884 = vld [vmem:[#allocation7 + $0x164] sm:$0xf]
        %v1885 = vld [vmem:[#allocation7 + $0x168] sm:$0xf]
        %v1886 = vld [vmem:[#allocation7 + $0x16c] sm:$0xf]
        %v1887 = vld [vmem:[#allocation7 + $0x170] sm:$0xf]
        %v1888 = vld [vmem:[#allocation7 + $0x174] sm:$0xf]
        %v1889 = vld [vmem:[#allocation7 + $0x178] sm:$0xf]
        %v1890 = vld [vmem:[#allocation7 + $0x17c] sm:$0xf]
        %v1907 = vunpack.c.l.b16 %v1875
        %v1908 = vunpack.c.l.b16 %v1876
        %v1909 = vunpack.c.l.b16 %v1877
        %v1910 = vunpack.c.l.b16 %v1878
        %v1911 = vunpack.c.l.b16 %v1879
        %v1912 = vunpack.c.l.b16 %v1880
        %v1913 = vunpack.c.l.b16 %v1881
        %v1914 = vunpack.c.l.b16 %v1882
        %v1915 = vunpack.c.l.b16 %v1883
        %v1916 = vunpack.c.l.b16 %v1884
        %v1917 = vunpack.c.l.b16 %v1885
        %v1918 = vunpack.c.l.b16 %v1886
        %v1919 = vunpack.c.l.b16 %v1887
        %v1920 = vunpack.c.l.b16 %v1888
        %v1921 = vunpack.c.l.b16 %v1889
        %v1922 = vunpack.c.l.b16 %v1890
        %v1923 = vpack.c.b16 %v1908, %v1907
        %v1924 = vpack.c.b16 %v1910, %v1909
        %v1925 = vpack.c.b16 %v1912, %v1911
        %v1926 = vpack.c.b16 %v1914, %v1913
        %v1927 = vpack.c.b16 %v1916, %v1915
        %v1928 = vpack.c.b16 %v1918, %v1917
        %v1929 = vpack.c.b16 %v1920, %v1919
        %v1930 = vpack.c.b16 %v1922, %v1921
        %1939 = vmatprep.subr.bf16.mxu0 0
        %1940 = vmatpush1.bf16.msra.mxu0 %v1930
        %1941 = vmatprep.subr.bf16.mxu0 0
        %1942 = vmatpush1.bf16.msra.mxu0 %v1929
        %1943 = vmatprep.subr.bf16.mxu0 0
        %1944 = vmatpush1.bf16.msra.mxu0 %v1928
        %1945 = vmatprep.subr.bf16.mxu0 0
        %1946 = vmatpush1.bf16.msra.mxu0 %v1927
        %1947 = vmatprep.subr.bf16.mxu0 0
        %1948 = vmatpush1.bf16.msra.mxu0 %v1926
        %1949 = vmatprep.subr.bf16.mxu0 0
        %1950 = vmatpush1.bf16.msra.mxu0 %v1925
        %1951 = vmatprep.subr.bf16.mxu0 0
        %1952 = vmatpush1.bf16.msra.mxu0 %v1924
        %1953 = vmatprep.subr.bf16.mxu0 0
        %1954 = vmatpush1.bf16.msra.mxu0 %v1923
        %1955 = vmatprep.subr.bf16.mxu0 0
        %1956 = vmatpush2.bf16.msra.mxu0 0
        %1957 = vmatprep.subr.bf16.mxu0 0
        %1958 = vmatpush2.bf16.msra.mxu0 0
        %1959 = vmatprep.subr.bf16.mxu0 0
        %1960 = vmatpush2.bf16.msra.mxu0 0
        %1961 = vmatprep.subr.bf16.mxu0 0
        %1962 = vmatpush2.bf16.msra.mxu0 0
        %1963 = vmatprep.subr.bf16.mxu0 0
        %1964 = vmatpush2.bf16.msra.mxu0 0
        %1965 = vmatprep.subr.bf16.mxu0 0
        %1966 = vmatpush2.bf16.msra.mxu0 0
        %1967 = vmatprep.subr.bf16.mxu0 0
        %1968 = vmatpush2.bf16.msra.mxu0 0
        %1969 = vmatprep.subr.bf16.mxu0 0
        %1970 = vmatpush2.bf16.msra.mxu0 0
        %1971 = vmatprep.mubr.bf16.mxu0 0
        %1972 = vmatmul.mubr.bf16.gmra.mxu0 %v1867
        %v1973 = vpop.f32.mrf.mxu0
        %v1974 = vadd.f32 %v290, %v1973
        %v1975 = vpop.f32.mrf.mxu0
        %v1976 = vpop.f32.mrf.mxu0
        %v1977 = vadd.f32 %v290, %v1976
        %v1978 = vpop.f32.mrf.mxu0
        %1979 = vmatprep.mubr.bf16.mxu0 0
        %1980 = vmatmul.mubr.bf16.gmra.mxu0 %v1868
        %v1981 = vpop.f32.mrf.mxu0
        %v1982 = vadd.f32 %v290, %v1981
        %v1983 = vpop.f32.mrf.mxu0
        %v1984 = vpop.f32.mrf.mxu0
        %v1985 = vadd.f32 %v290, %v1984
        %v1986 = vpop.f32.mrf.mxu0
        %1987 = vmatprep.mubr.bf16.mxu0 0
        %1988 = vmatmul.mubr.bf16.gmra.mxu0 %v1869
        %v1989 = vpop.f32.mrf.mxu0
        %v1990 = vadd.f32 %v290, %v1989
        %v1991 = vpop.f32.mrf.mxu0
        %v1992 = vpop.f32.mrf.mxu0
        %v1993 = vadd.f32 %v290, %v1992
        %v1994 = vpop.f32.mrf.mxu0
        %1995 = vmatprep.mubr.bf16.mxu0 0
        %1996 = vmatmul.mubr.bf16.gmra.mxu0 %v1870
        %v1997 = vpop.f32.mrf.mxu0
        %v1998 = vadd.f32 %v290, %v1997
        %v1999 = vpop.f32.mrf.mxu0
        %v2000 = vpop.f32.mrf.mxu0
        %v2001 = vadd.f32 %v290, %v2000
        %v2002 = vpop.f32.mrf.mxu0
        %2003 = vmatprep.mubr.bf16.mxu0 0
        %2004 = vmatmul.mubr.bf16.gmra.mxu0 %v1871
        %v2005 = vpop.f32.mrf.mxu0
        %v2006 = vadd.f32 %v290, %v2005
        %v2007 = vpop.f32.mrf.mxu0
        %v2008 = vpop.f32.mrf.mxu0
        %v2009 = vadd.f32 %v290, %v2008
        %v2010 = vpop.f32.mrf.mxu0
        %2011 = vmatprep.mubr.bf16.mxu0 0
        %2012 = vmatmul.mubr.bf16.gmra.mxu0 %v1872
        %v2013 = vpop.f32.mrf.mxu0
        %v2014 = vadd.f32 %v290, %v2013
        %v2015 = vpop.f32.mrf.mxu0
        %v2016 = vpop.f32.mrf.mxu0
        %v2017 = vadd.f32 %v290, %v2016
        %v2018 = vpop.f32.mrf.mxu0
        %2019 = vmatprep.mubr.bf16.mxu0 0
        %2020 = vmatmul.mubr.bf16.gmra.mxu0 %v1873
        %v2021 = vpop.f32.mrf.mxu0
        %v2022 = vadd.f32 %v290, %v2021
        %v2023 = vpop.f32.mrf.mxu0
        %v2024 = vpop.f32.mrf.mxu0
        %v2025 = vadd.f32 %v290, %v2024
        %v2026 = vpop.f32.mrf.mxu0
        %2027 = vmatprep.mubr.bf16.mxu0 0
        %2028 = vmatmul.mubr.bf16.gmra.mxu0 %v1874
        %v2029 = vpop.f32.mrf.mxu0
        %v2030 = vadd.f32 %v290, %v2029
        %v2031 = vpop.f32.mrf.mxu0
        %v2032 = vpop.f32.mrf.mxu0
        %v2033 = vadd.f32 %v290, %v2032
        %v2034 = vpop.f32.mrf.mxu0
        %2035 = vdwg.mxu0
        %2036 = vst [vmem:[%s257] sm:$0xff] %v1974
        %2037 = vst [vmem:[%s257 + $0x8] sm:$0xff] %v1977
        %2038 = vst [vmem:[%s257 + $0x10] sm:$0xff] %v1982
        %2039 = vst [vmem:[%s257 + $0x18] sm:$0xff] %v1985
        %2040 = vst [vmem:[%s257 + $0x20] sm:$0xff] %v1990
        %2041 = vst [vmem:[%s257 + $0x28] sm:$0xff] %v1993
        %2042 = vst [vmem:[%s257 + $0x30] sm:$0xff] %v1998
        %2043 = vst [vmem:[%s257 + $0x38] sm:$0xff] %v2001
        %2044 = vst [vmem:[%s257 + $0x40] sm:$0xff] %v2006
        %2045 = vst [vmem:[%s257 + $0x48] sm:$0xff] %v2009
        %2046 = vst [vmem:[%s257 + $0x50] sm:$0xff] %v2014
        %2047 = vst [vmem:[%s257 + $0x58] sm:$0xff] %v2017
        %2048 = vst [vmem:[%s257 + $0x60] sm:$0xff] %v2022
        %2049 = vst [vmem:[%s257 + $0x68] sm:$0xff] %v2025
        %2050 = vst [vmem:[%s257 + $0x70] sm:$0xff] %v2030
        %2051 = vst [vmem:[%s257 + $0x78] sm:$0xff] %v2033
        %s2052 = sand.u32 %s120, 1
        %s2053 = scalar_lea.sflag [#allocation4], %s2052
        %s2054 = sand.u32 %s120, 1
        %s2055 = smul.addr %s2054, 128
        %s2056 = scalar_lea.vmem [#allocation10], %s2055
        // Predicated region
        $region53: #{tpu_custom_call.1} parent=35 // pred_check
          %p2057 = pneg %p130
        $region54: #{tpu_custom_call.1} parent=35 // pred_check_branch
          %2059 = sbr.rel (%p2057) target = $region56
        $region55: #{tpu_custom_call.1} parent=35 // pred_region
          %s2060 = smul.u32 16, %s23
          %s2062 = ssub.s32 2048, 2048
          %2063 = vsyncadd %s2053, %s2062
          %s2064 = smul.addr %s2060, 128
          %s2065 = scalar_lea.hbm %s4, %s2064
          %s2066 = sshll.u32 %s2056, 4
          %s2067 = int_to_ptr.vmem [resolvable:$true] %s2066
          %2072 = dma.vmem_to_hbm [thread:$0]  %s2067, 2048, %s2065, %s2053, 128, 128, 8
        $region56: #{tpu_custom_call.1} parent=35 // pred_fallthru
          _
      $region36: #{tpu_custom_call.1} parent=5 // pred_fallthru
        _
      %p2073 = scmp.le.s32.totalorder 2, %s18
      // Predicated region
      $region57: #{tpu_custom_call.1} parent=5 // pred_check
        %p2074 = pneg %p2073
      $region58: #{tpu_custom_call.1} parent=5 // pred_check_branch
        %2076 = sbr.rel (%p2074) target = $region60
      $region59: #{tpu_custom_call.1} parent=5 // pred_region
        %s2077 = ssub.s32 %s18, 2
        // Predicated region
        $region61: #{tpu_custom_call.1} parent=59 // pred_check
          %p2078 = pneg %p136
        $region62: #{tpu_custom_call.1} parent=59 // pred_check_branch
          %2080 = sbr.rel (%p2078) target = $region64
        $region63: #{tpu_custom_call.1} parent=59 // pred_region
          %s2081 = sand.u32 %s121, 1
          %s2082 = scalar_lea.sflag [#allocation4], %s2081
          %s2083 = sand.u32 %s121, 1
          %s2084 = smul.addr %s2083, 128
          %s2085 = scalar_lea.vmem [#allocation10], %s2084
          %2086 = dma.done %s2082, 2048
        $region64: #{tpu_custom_call.1} parent=59 // pred_fallthru
          _
      $region60: #{tpu_custom_call.1} parent=5 // pred_fallthru
        _
    $region6: #{tpu_custom_call.1} parent=1 // loop_footer
      %s22 = sadd.s32 1, %s18
    $region7: #{tpu_custom_call.1} parent=1 // loop_footer_branch
      %17 = sbr.rel target = $region3
    $region8: #{tpu_custom_call.1} parent=1 // loop_exit
      _
    %2087 = vsyncpa [#allocation3], 1
    %s2088 = scalar_lea.sflag [#allocation3], 1
    %2089 = vsyncpa %s2088, 1
    %2090 = vsyncpa [#allocation6], 1
    %2091 = vsyncpa [#allocation9], 1
    %2092 = vsyncpa [#allocation4], 1
    %s2093 = scalar_lea.sflag [#allocation4], 1
    %2094 = vsyncpa %s2093, 1

</llo_original>
